<compile_context>
chip_gen: v7x
topology: tpu7x:2x2x1
jax: 0.10.0
libtpu: 0.0.40
codegen_flags: <defaults>
</compile_context>

<pallas_src>
import functools

import jax
import jax.numpy as jnp
from jax.experimental import pallas as pl
from jax.experimental.pallas import tpu as pltpu


def _round_up(x, m):
    return ((x + m - 1) // m) * m


def _row_tile_cap(max_rows_per_step):
    """Generation-aware row-tile cap (always a multiple of 16 for bf16 packing)."""
    if max_rows_per_step is not None:
        return max(16, _round_up(int(max_rows_per_step), 16))
    try:
        vmem_bytes = getattr(pltpu.get_tpu_info(), "vmem_capacity_bytes", 64 << 20)
    except Exception:
        vmem_bytes = 64 << 20
    # x tile (rows x 32 bf16, double-buffered) + f32 h temp (rows x 128):
    # 8192 rows ~= 5 MiB, comfortably inside every generation's scoped VMEM;
    # keep 4096 on 64 MiB-per-core chips (v7x) for pipelining headroom.
    return 8192 if vmem_bytes >= (100 << 20) else 4096


def _silu_f32(h):
    """SiLU with the sigmoid evaluated on packed bf16 vregs (halves EUP pushes
    on v6e/v7x; legalized to f32 on older chips); multiply stays in f32."""
    return h * jax.nn.sigmoid(h.astype(jnp.bfloat16)).astype(jnp.float32)


# ----------------------------------------------------------------------------
# Kernels
#   x_ref   : (1, TILE_ROWS, K_pad)    bf16   im2col rows of one image
#   w_ref   : (K_pad, COUT_PAD)        bf16   folded conv weights
#   b_ref   : (1, COUT_PAD)            f32    folded conv/BN bias
#   fcw_ref : (COUT_PAD, NCLS_PAD)     f32    classifier weight (zero-padded)
#   fcb_ref : (1, NCLS_PAD)            f32    classifier bias   (zero-padded)
#   o_ref   : (1, 8, NCLS_PAD)         f32    logits (row 0 is valid)
#   acc_ref : (1, COUT_PAD)            f32    running pooled-sum scratch (tiled)
# ----------------------------------------------------------------------------
def _single_step_kernel(x_ref, w_ref, b_ref, fcw_ref, fcb_ref, o_ref, *,
                        inv_hw, n_pad_rows):
    # Conv stem as one MXU matmul (bf16 operands, f32 accumulation).
    h = jnp.dot(x_ref[0], w_ref[...], preferred_element_type=jnp.float32)
    h = _silu_f32(h + b_ref[...])
    pooled = jnp.sum(h, axis=0, keepdims=True)                  # (1, COUT_PAD)
    if n_pad_rows:  # zero-padded rows each contribute exactly SiLU(bias)
        pooled = pooled - n_pad_rows * _silu_f32(b_ref[...])
    pooled = pooled * inv_hw
    logits = jnp.dot(pooled, fcw_ref[...],
                     preferred_element_type=jnp.float32) + fcb_ref[...]
    # Lane-dense, sublane-padded store: write a full (8, 128) tile.
    o_ref[0] = jnp.broadcast_to(logits, o_ref.shape[1:])


def _tiled_kernel(x_ref, w_ref, b_ref, fcw_ref, fcb_ref, o_ref, acc_ref, *,
                  inv_hw, n_pad_rows):
    t = pl.program_id(1)

    @pl.when(t == 0)
    def _init():
        acc_ref[...] = jnp.zeros_like(acc_ref)

    h = jnp.dot(x_ref[0], w_ref[...], preferred_element_type=jnp.float32)
    h = _silu_f32(h + b_ref[...])
    # Per-tile row-sum: with large tiles the single 8->1 cross-sublane reduce
    # per tile is fully amortized behind the MXU / EUP work.
    acc_ref[...] += jnp.sum(h, axis=0, keepdims=True)

    @pl.when(t == pl.num_programs(1) - 1)
    def _finalize():
        pooled = acc_ref[...]
        if n_pad_rows:  # remove the zero-padded tail rows' SiLU(bias) term
            pooled = pooled - n_pad_rows * _silu_f32(b_ref[...])
        pooled = pooled * inv_hw
        logits = jnp.dot(pooled, fcw_ref[...],
                         preferred_element_type=jnp.float32) + fcb_ref[...]
        o_ref[0] = jnp.broadcast_to(logits, o_ref.shape[1:])


# ----------------------------------------------------------------------------
# JAX glue: bf16 im2col (K padding folded in), BN folding, padding, pallas_call
# ----------------------------------------------------------------------------
def _im2col_3x3_same_bf16(x_nhwc, k_extra):
    """3x3 patches, stride 1, SAME padding, done in bf16, with K padding
    folded into the concat.  Column order (dh, dw, cin)."""
    B, H, W, C = x_nhwc.shape
    xp = jnp.pad(x_nhwc, ((0, 0), (1, 1), (1, 1), (0, 0)))
    cols = [xp[:, dh:dh + H, dw:dw + W, :] for dh in range(3) for dw in range(3)]
    if k_extra:
        cols.append(jnp.zeros((B, H, W, k_extra), x_nhwc.dtype))
    return jnp.concatenate(cols, axis=-1).reshape(B, H * W, 9 * C + k_extra)


def init_params(key, in_ch, n_features, n_class):
    ks = jax.random.split(key, 8)
    p = {}
    # conv stem weight in HWIO, matches the (dh, dw, cin) im2col column order
    p["conv_w"] = 0.1 * jax.random.normal(ks[0], (3, 3, in_ch, n_features), jnp.float32)
    p["conv_b"] = 0.05 * jax.random.normal(ks[1], (n_features,), jnp.float32)
    # batch norm (inference mode, folded into conv weight/bias)
    p["bn_gamma"] = 1.0 + 0.1 * jax.random.normal(ks[2], (n_features,), jnp.float32)
    p["bn_beta"] = 0.1 * jax.random.normal(ks[3], (n_features,), jnp.float32)
    p["bn_mean"] = 0.1 * jax.random.normal(ks[4], (n_features,), jnp.float32)
    p["bn_var"] = jnp.abs(1.0 + 0.1 * jax.random.normal(ks[5], (n_features,), jnp.float32))
    # replaced classifier: nn.Linear(n_features, n_class)
    p["fc_w"] = 0.1 * jax.random.normal(ks[6], (n_features, n_class), jnp.float32)
    p["fc_b"] = 0.05 * jax.random.normal(ks[7], (n_class,), jnp.float32)
    return p


def cassva_forward(x_nchw, params, *, max_rows_per_step=None):
    """Forward pass. Input follows PyTorch NCHW convention; converted to NHWC."""
    B, Cin, H, W = x_nchw.shape
    HW = H * W
    n_features = params["conv_w"].shape[-1]
    n_class = params["fc_w"].shape[-1]

    K = 9 * Cin
    K_pad = _round_up(K, 8)                   # 27 -> 32 (kept memory-optimal)
    COUT_PAD = _round_up(n_features, 128)     # lane-dense
    NCLS_PAD = _round_up(n_class, 128)        # lane-dense

    # ---- fold BatchNorm (inference) into conv weight/bias, pad params ----
    eps = 1e-5
    scale = params["bn_gamma"] * jax.lax.rsqrt(params["bn_var"] + eps)
    w_col = params["conv_w"].reshape(K, n_features) * scale[None, :]
    bias = (params["conv_b"] - params["bn_mean"]) * scale + params["bn_beta"]

    w_pad = (jnp.zeros((K_pad, COUT_PAD), jnp.float32)
             .at[:K, :n_features].set(w_col).astype(jnp.bfloat16))
    b_pad = jnp.zeros((1, COUT_PAD), jnp.float32).at[0, :n_features].set(bias)
    # Classifier weights stay f32: one-time tiny DMA, avoids extra rounding.
    fcw_pad = (jnp.zeros((COUT_PAD, NCLS_PAD), jnp.float32)
               .at[:n_features, :n_class].set(params["fc_w"]))
    fcb_pad = jnp.zeros((1, NCLS_PAD), jnp.float32).at[0, :n_class].set(params["fc_b"])

    # ---- activations: NCHW -> NHWC, bf16 BEFORE im2col, K pad folded in ----
    x_nhwc = jnp.transpose(x_nchw, (0, 2, 3, 1)).astype(jnp.bfloat16)
    x_col = _im2col_3x3_same_bf16(x_nhwc, K_pad - K)          # (B, HW, K_pad) bf16

    tile_cap = _row_tile_cap(max_rows_per_step)
    inv_hw = 1.0 / HW
    out_shape = jax.ShapeDtypeStruct((B, 8, NCLS_PAD), jnp.float32)

    if HW <= tile_cap:
        # -------- single-step path: no reduction axis, no scratch ----------
        rows_pad = _round_up(HW, 16)
        n_pad_rows = rows_pad - HW
        if n_pad_rows:
            x_col = jnp.pad(x_col, ((0, 0), (0, n_pad_rows), (0, 0)))
        kernel = functools.partial(_single_step_kernel,
                                   inv_hw=inv_hw, n_pad_rows=n_pad_rows)
        out = pl.pallas_call(
            kernel,
            out_shape=out_shape,
            grid_spec=pltpu.PrefetchScalarGridSpec(
                num_scalar_prefetch=0,
                grid=(B,),
                in_specs=[
                    pl.BlockSpec((1, rows_pad, K_pad), lambda b: (b, 0, 0)),
                    pl.BlockSpec((K_pad, COUT_PAD), lambda b: (0, 0)),
                    pl.BlockSpec((1, COUT_PAD), lambda b: (0, 0)),
                    pl.BlockSpec((COUT_PAD, NCLS_PAD), lambda b: (0, 0)),
                    pl.BlockSpec((1, NCLS_PAD), lambda b: (0, 0)),
                ],
                out_specs=pl.BlockSpec((1, 8, NCLS_PAD), lambda b: (b, 0, 0)),
            ),
            compiler_params=pltpu.CompilerParams(
                dimension_semantics=("parallel",)),
        )(x_col, w_pad, b_pad, fcw_pad, fcb_pad)
    else:
        # -------- tiled path: large fixed row tiles, cdiv grid, tail fixed --
        tile_rows = tile_cap
        nt = pl.cdiv(HW, tile_rows)
        rows_pad = nt * tile_rows
        n_pad_rows = rows_pad - HW
        if n_pad_rows:
            x_col = jnp.pad(x_col, ((0, 0), (0, n_pad_rows), (0, 0)))
        kernel = functools.partial(_tiled_kernel,
                                   inv_hw=inv_hw, n_pad_rows=n_pad_rows)
        out = pl.pallas_call(
            kernel,
            out_shape=out_shape,
            grid_spec=pltpu.PrefetchScalarGridSpec(
                num_scalar_prefetch=0,
                grid=(B, nt),
                in_specs=[
                    pl.BlockSpec((1, tile_rows, K_pad), lambda b, t: (b, t, 0)),
                    pl.BlockSpec((K_pad, COUT_PAD), lambda b, t: (0, 0)),
                    pl.BlockSpec((1, COUT_PAD), lambda b, t: (0, 0)),
                    pl.BlockSpec((COUT_PAD, NCLS_PAD), lambda b, t: (0, 0)),
                    pl.BlockSpec((1, NCLS_PAD), lambda b, t: (0, 0)),
                ],
                out_specs=pl.BlockSpec((1, 8, NCLS_PAD), lambda b, t: (b, 0, 0)),
                scratch_shapes=[pltpu.VMEM((1, COUT_PAD), jnp.float32)],
            ),
            compiler_params=pltpu.CompilerParams(
                dimension_semantics=("parallel", "arbitrary"),
                vmem_limit_bytes=32 * 1024 * 1024),
        )(x_col, w_pad, b_pad, fcw_pad, fcb_pad)

    # slice off sublane / lane padding
    return out[:, 0, :n_class]


def reference_forward(x_nchw, params):
    """Pure-JAX reference with the same bf16 rounding as the kernel."""
    B, Cin, H, W = x_nchw.shape
    n_features = params["conv_w"].shape[-1]
    eps = 1e-5
    scale = params["bn_gamma"] / jnp.sqrt(params["bn_var"] + eps)
    w_col = params["conv_w"].reshape(9 * Cin, n_features) * scale[None, :]
    bias = (params["conv_b"] - params["bn_mean"]) * scale + params["bn_beta"]

    x_nhwc = jnp.transpose(x_nchw, (0, 2, 3, 1)).astype(jnp.bfloat16).astype(jnp.float32)
    xp = jnp.pad(x_nhwc, ((0, 0), (1, 1), (1, 1), (0, 0)))
    cols = [xp[:, dh:dh + H, dw:dw + W, :] for dh in range(3) for dw in range(3)]
    x_col = jnp.concatenate(cols, axis=-1).reshape(B, H * W, 9 * Cin)

    wb = w_col.astype(jnp.bfloat16).astype(jnp.float32)
    h = jnp.einsum("bmk,kf->bmf", x_col, wb) + bias[None, None, :]
    h = h * jax.nn.sigmoid(h.astype(jnp.bfloat16)).astype(jnp.float32)
    pooled = jnp.mean(h, axis=1)
    return pooled @ params["fc_w"] + params["fc_b"][None, :]


if __name__ == "__main__":
    key = jax.random.PRNGKey(0)
    k_params, k_x = jax.random.split(key)

    batch, in_ch, spatial = 2, 3, 32
    n_features, n_class = 32, 5

    params = init_params(k_params, in_ch, n_features, n_class)
    x = jax.random.normal(k_x, (batch, in_ch, spatial, spatial), jnp.float32)

    ref = reference_forward(x, params)

    # Path A: single-step kernel (whole image fits one row tile).
    fwd = jax.jit(cassva_forward)
    out = jax.block_until_ready(fwd(x, params))
    assert out.shape == (batch, n_class), out.shape
    assert jnp.all(jnp.isfinite(out))
    assert jnp.allclose(out, ref, rtol=2e-2, atol=2e-2), (out, ref)

    # Path B: tiled-reduction kernel (forced small tile to exercise the cdiv
    # grid + ragged-tail correction used for large images).
    fwd_tiled = jax.jit(functools.partial(cassva_forward, max_rows_per_step=320))
    out_tiled = jax.block_until_ready(fwd_tiled(x, params))
    assert out_tiled.shape == (batch, n_class), out_tiled.shape
    assert jnp.all(jnp.isfinite(out_tiled))
    assert jnp.allclose(out_tiled, ref, rtol=2e-2, atol=2e-2), (out_tiled, ref)

    print("KERNEL_OK")
</pallas_src>

<mosaic_0001>
module attributes {stable_mosaic.version = 11 : i64} {
  func.func @_single_step_kernel(%arg0: i32, %arg1: memref<1x1024x32xbf16, #tpu.memory_space<vmem>>, %arg2: memref<32x128xbf16, #tpu.memory_space<vmem>>, %arg3: memref<1x128xf32, #tpu.memory_space<vmem>>, %arg4: memref<128x128xf32, #tpu.memory_space<vmem>>, %arg5: memref<1x128xf32, #tpu.memory_space<vmem>>, %arg6: memref<1x8x128xf32, #tpu.memory_space<vmem>>) attributes {dimension_semantics = [#tpu.dimension_semantics<parallel>], iteration_bounds = array<i64: 2>, scalar_prefetch = 0 : i64, scratch_operands = 0 : i64, tpu.core_type = #tpu.core_type<tc>, window_params = [{transform_indices = @transform_0, window_bounds = array<i64: 1, 1024, 32>}, {pipeline_mode = #tpu.pipeline_mode<synchronous>, transform_indices = @transform_1, window_bounds = array<i64: 32, 128>}, {pipeline_mode = #tpu.pipeline_mode<synchronous>, transform_indices = @transform_2, window_bounds = array<i64: 1, 128>}, {pipeline_mode = #tpu.pipeline_mode<synchronous>, transform_indices = @transform_3, window_bounds = array<i64: 128, 128>}, {pipeline_mode = #tpu.pipeline_mode<synchronous>, transform_indices = @transform_4, window_bounds = array<i64: 1, 128>}, {transform_indices = @transform_5, window_bounds = array<i64: 1, 8, 128>}]} {
    %c0 = arith.constant 0 : index
    %c0_0 = arith.constant 0 : index
    %c0_1 = arith.constant 0 : index
    %0 = vector.load %arg1[%c0, %c0_0, %c0_1] : memref<1x1024x32xbf16, #tpu.memory_space<vmem>>, vector<1x1024x32xbf16>
    %1 = vector.shape_cast %0 : vector<1x1024x32xbf16> to vector<1024x32xbf16>
    %c0_2 = arith.constant 0 : index
    %c0_3 = arith.constant 0 : index
    %2 = vector.load %arg2[%c0_2, %c0_3] : memref<32x128xbf16, #tpu.memory_space<vmem>>, vector<32x128xbf16>
    %cst = arith.constant dense<0.000000e+00> : vector<1024x128xf32>
    %3 = tpu.matmul %1, %2, %cst {dimension_numbers = #tpu.dot_dimension_numbers<[1], [0], [0], [1], [0, 0, 1, 1], [], []>} : vector<1024x32xbf16>, vector<32x128xbf16>, vector<1024x128xf32> -> vector<1024x128xf32>
    %c0_4 = arith.constant 0 : index
    %c0_5 = arith.constant 0 : index
    %4 = vector.load %arg3[%c0_4, %c0_5] : memref<1x128xf32, #tpu.memory_space<vmem>>, vector<1x128xf32>
    %5 = vector.broadcast %4 : vector<1x128xf32> to vector<1024x128xf32>
    %6 = arith.addf %3, %5 : vector<1024x128xf32>
    %7 = arith.truncf %6 : vector<1024x128xf32> to vector<1024x128xbf16>
    %8 = arith.negf %7 : vector<1024x128xbf16>
    %9 = math.exp %8 : vector<1024x128xbf16>
    %cst_6 = arith.constant 1.000000e+00 : bf16
    %10 = vector.broadcast %cst_6 : bf16 to vector<1024x128xbf16>
    %11 = arith.addf %10, %9 : vector<1024x128xbf16>
    %12 = arith.divf %10, %11 : vector<1024x128xbf16>
    %13 = arith.extf %12 : vector<1024x128xbf16> to vector<1024x128xf32>
    %14 = arith.mulf %6, %13 : vector<1024x128xf32>
    %cst_7 = arith.constant dense<0.000000e+00> : vector<128xf32>
    %15 = vector.multi_reduction <add>, %14, %cst_7 [0] : vector<1024x128xf32> to vector<128xf32>
    %16 = vector.shape_cast %15 : vector<128xf32> to vector<1x128xf32>
    %cst_8 = arith.constant 9.765625E-4 : f32
    %17 = vector.broadcast %cst_8 : f32 to vector<1x128xf32>
    %18 = arith.mulf %16, %17 : vector<1x128xf32>
    %c0_9 = arith.constant 0 : index
    %c0_10 = arith.constant 0 : index
    %19 = vector.load %arg4[%c0_9, %c0_10] : memref<128x128xf32, #tpu.memory_space<vmem>>, vector<128x128xf32>
    %cst_11 = arith.constant dense<0.000000e+00> : vector<1x128xf32>
    %20 = tpu.matmul %18, %19, %cst_11 {dimension_numbers = #tpu.dot_dimension_numbers<[1], [0], [0], [1], [0, 0, 1, 1], [], []>} : vector<1x128xf32>, vector<128x128xf32>, vector<1x128xf32> -> vector<1x128xf32>
    %c0_12 = arith.constant 0 : index
    %c0_13 = arith.constant 0 : index
    %21 = vector.load %arg5[%c0_12, %c0_13] : memref<1x128xf32, #tpu.memory_space<vmem>>, vector<1x128xf32>
    %22 = arith.addf %20, %21 : vector<1x128xf32>
    %23 = vector.shape_cast %22 : vector<1x128xf32> to vector<1x128xf32>
    %24 = vector.broadcast %23 : vector<1x128xf32> to vector<8x128xf32>
    %c0_14 = arith.constant 0 : index
    %c0_15 = arith.constant 0 : index
    %c0_16 = arith.constant 0 : index
    %25 = vector.load %arg6[%c0_14, %c0_15, %c0_16] : memref<1x8x128xf32, #tpu.memory_space<vmem>>, vector<1x8x128xf32>
    %26 = vector.shape_cast %25 : vector<1x8x128xf32> to vector<8x128xf32>
    %27 = vector.shape_cast %24 : vector<8x128xf32> to vector<1x8x128xf32>
    tpu.vector_store %arg6[%c0_14, %c0_15, %c0_16], %27 {strides = array<i32>} : memref<1x8x128xf32, #tpu.memory_space<vmem>>, vector<1x8x128xf32>,
    return
  }
  func.func @transform_0(%arg0: i32) -> (i32, i32, i32) {
    %c0_i32 = arith.constant 0 : i32
    %c0_i32_0 = arith.constant 0 : i32
    %c0_i32_1 = arith.constant 0 : i32
    return %arg0, %c0_i32, %c0_i32_0 : i32, i32, i32
  }
  func.func @transform_1(%arg0: i32) -> (i32, i32) {
    %c0_i32 = arith.constant 0 : i32
    %c0_i32_0 = arith.constant 0 : i32
    %c0_i32_1 = arith.constant 0 : i32
    return %c0_i32, %c0_i32_0 : i32, i32
  }
  func.func @transform_2(%arg0: i32) -> (i32, i32) {
    %c0_i32 = arith.constant 0 : i32
    %c0_i32_0 = arith.constant 0 : i32
    %c0_i32_1 = arith.constant 0 : i32
    return %c0_i32, %c0_i32_0 : i32, i32
  }
  func.func @transform_3(%arg0: i32) -> (i32, i32) {
    %c0_i32 = arith.constant 0 : i32
    %c0_i32_0 = arith.constant 0 : i32
    %c0_i32_1 = arith.constant 0 : i32
    return %c0_i32, %c0_i32_0 : i32, i32
  }
  func.func @transform_4(%arg0: i32) -> (i32, i32) {
    %c0_i32 = arith.constant 0 : i32
    %c0_i32_0 = arith.constant 0 : i32
    %c0_i32_1 = arith.constant 0 : i32
    return %c0_i32, %c0_i32_0 : i32, i32
  }
  func.func @transform_5(%arg0: i32) -> (i32, i32, i32) {
    %c0_i32 = arith.constant 0 : i32
    %c0_i32_0 = arith.constant 0 : i32
    %c0_i32_1 = arith.constant 0 : i32
    return %arg0, %c0_i32, %c0_i32_0 : i32, i32, i32
  }
}

</mosaic_0001>

<llo_original>
// kernel: cassva_forward.1
$region0: #{cassva_forward.1}
  #allocation0 [shape = 'u32[]', space=smem, size = 0x4, offset = 0x4, fixed_abs, tag = 'smem constant byte address 0x4 - core index']
  #allocation1 [shape = 'u32[144,128]{1,0:T(1,128)}', space=vmem, size = 0x12000, scoped, tag = 'internal scratch']
  %s0 = inlined_call_operand.vmem [shape: bf16[2,1024,32], index: 0, kind: input, shape index: {}]
  %s1 = inlined_call_operand.vmem [shape: bf16[32,128], index: 1, kind: input, shape index: {}]
  %s2 = inlined_call_operand.vmem [shape: f32[1,128], index: 2, kind: input, shape index: {}]
  %s3 = inlined_call_operand.vmem [shape: f32[128,128], index: 3, kind: input, shape index: {}]
  %s4 = inlined_call_operand.vmem [shape: f32[1,128], index: 4, kind: input, shape index: {}]
  %s5 = inlined_call_operand.vmem [shape: f32[2,8,128], index: 5, kind: output, shape index: {}]
  %s6 = sld [smem:[#allocation0]]
  $region53: #{cassva_forward.1} parent=0
    _
  %s8 = ssub.s32 1, %s6
  %s9 = scalar_select 0, %s8, %s6
  loop: start=0, step=1, limit=4
  $region2: #{cassva_forward.1} parent=0 // loop_pre_header
    _
  $region3: #{cassva_forward.1} parent=0 // loop_header
    %s11 = sphi 0, %s15
    %p12 = scmp.ge.s32.totalorder %s11, 4
    %s21 = sphi 0, %s23
    %s24 = sphi 0, %s21
    %s25 = sphi 0, %s24
    %s41 = sphi 0, %s25
    %s45 = sphi 0, %s45
    %s47 = sphi 0, %s45
    %s48 = sphi 0, %s47
    %s62 = sphi 0, %s48
    %s66 = sphi 0, %s66
    %s68 = sphi 0, %s66
    %s69 = sphi 0, %s68
    %s83 = sphi 0, %s69
    %s87 = sphi 0, %s87
    %s89 = sphi 0, %s87
    %s90 = sphi 0, %s89
    %s104 = sphi 0, %s90
    %s108 = sphi 0, %s108
    %s110 = sphi 0, %s108
    %s111 = sphi 0, %s110
    %s125 = sphi 0, %s111
    %s131 = sphi 0, %s133
    %s134 = sphi 0, %s131
    %s135 = sphi 0, %s134
    %s151 = sphi 0, %s135
  $region4: #{cassva_forward.1} parent=0 // loop_header_branch
    %14 = sbr.rel (%p12) target = $region8
  $region5: #{cassva_forward.1} parent=0 // loop_body
    %s16 = ssub.s32 %s11, 1
    %s17 = ssub.s32 %s11, 2
    %s18 = sadd.s32 %s11, 1
    %s19 = ssub.s32 %s11, %s18
    %p20 = scmp.eq.s32.totalorder %s19, 0
    %s22 = sadd.s32 %s21, 1
    %s23 = scalar_select %p20, %s21, %s22
    %p26 = pneg %p20
    %p27 = scmp.eq.s32.totalorder %s11, 1
    %p28 = por %p26, %p27
    %p29 = scmp.ne.s32.totalorder %s21, %s24
    %p30 = scmp.eq.s32.totalorder %s11, 0
    %p31 = por %p29, %p30
    %p32 = scmp.ne.s32.totalorder %s21, %s24
    %p33 = scmp.eq.s32.totalorder %s16, 1
    %p34 = por %p32, %p33
    %p35 = scmp.ne.s32.totalorder %s24, %s25
    %p36 = scmp.eq.s32.totalorder %s16, 0
    %p37 = por %p35, %p36
    %p38 = scmp.ne.s32.totalorder %s24, %s25
    %p39 = scmp.eq.s32.totalorder %s17, 1
    %p40 = por %p38, %p39
    %p42 = scmp.ne.s32.totalorder %s25, %s41
    %p43 = scmp.eq.s32.totalorder %s17, 0
    %p44 = por %p42, %p43
    %s46 = sadd.s32 %s45, 1
    %p49 = scmp.eq.s32.totalorder %s11, 1
    %p50 = scmp.ne.s32.totalorder %s45, %s47
    %p51 = scmp.eq.s32.totalorder %s11, 0
    %p52 = por %p50, %p51
    %p53 = scmp.ne.s32.totalorder %s45, %s47
    %p54 = scmp.eq.s32.totalorder %s16, 1
    %p55 = por %p53, %p54
    %p56 = scmp.ne.s32.totalorder %s47, %s48
    %p57 = scmp.eq.s32.totalorder %s16, 0
    %p58 = por %p56, %p57
    %p59 = scmp.ne.s32.totalorder %s47, %s48
    %p60 = scmp.eq.s32.totalorder %s17, 1
    %p61 = por %p59, %p60
    %p63 = scmp.ne.s32.totalorder %s48, %s62
    %p64 = scmp.eq.s32.totalorder %s17, 0
    %p65 = por %p63, %p64
    %s67 = sadd.s32 %s66, 1
    %p70 = scmp.eq.s32.totalorder %s11, 1
    %p71 = scmp.ne.s32.totalorder %s66, %s68
    %p72 = scmp.eq.s32.totalorder %s11, 0
    %p73 = por %p71, %p72
    %p74 = scmp.ne.s32.totalorder %s66, %s68
    %p75 = scmp.eq.s32.totalorder %s16, 1
    %p76 = por %p74, %p75
    %p77 = scmp.ne.s32.totalorder %s68, %s69
    %p78 = scmp.eq.s32.totalorder %s16, 0
    %p79 = por %p77, %p78
    %p80 = scmp.ne.s32.totalorder %s68, %s69
    %p81 = scmp.eq.s32.totalorder %s17, 1
    %p82 = por %p80, %p81
    %p84 = scmp.ne.s32.totalorder %s69, %s83
    %p85 = scmp.eq.s32.totalorder %s17, 0
    %p86 = por %p84, %p85
    %s88 = sadd.s32 %s87, 1
    %p91 = scmp.eq.s32.totalorder %s11, 1
    %p92 = scmp.ne.s32.totalorder %s87, %s89
    %p93 = scmp.eq.s32.totalorder %s11, 0
    %p94 = por %p92, %p93
    %p95 = scmp.ne.s32.totalorder %s87, %s89
    %p96 = scmp.eq.s32.totalorder %s16, 1
    %p97 = por %p95, %p96
    %p98 = scmp.ne.s32.totalorder %s89, %s90
    %p99 = scmp.eq.s32.totalorder %s16, 0
    %p100 = por %p98, %p99
    %p101 = scmp.ne.s32.totalorder %s89, %s90
    %p102 = scmp.eq.s32.totalorder %s17, 1
    %p103 = por %p101, %p102
    %p105 = scmp.ne.s32.totalorder %s90, %s104
    %p106 = scmp.eq.s32.totalorder %s17, 0
    %p107 = por %p105, %p106
    %s109 = sadd.s32 %s108, 1
    %p112 = scmp.eq.s32.totalorder %s11, 1
    %p113 = scmp.ne.s32.totalorder %s108, %s110
    %p114 = scmp.eq.s32.totalorder %s11, 0
    %p115 = por %p113, %p114
    %p116 = scmp.ne.s32.totalorder %s108, %s110
    %p117 = scmp.eq.s32.totalorder %s16, 1
    %p118 = por %p116, %p117
    %p119 = scmp.ne.s32.totalorder %s110, %s111
    %p120 = scmp.eq.s32.totalorder %s16, 0
    %p121 = por %p119, %p120
    %p122 = scmp.ne.s32.totalorder %s110, %s111
    %p123 = scmp.eq.s32.totalorder %s17, 1
    %p124 = por %p122, %p123
    %p126 = scmp.ne.s32.totalorder %s111, %s125
    %p127 = scmp.eq.s32.totalorder %s17, 0
    %p128 = por %p126, %p127
    %s129 = ssub.s32 %s11, %s18
    %p130 = scmp.eq.s32.totalorder %s129, 0
    %s132 = sadd.s32 %s131, 1
    %s133 = scalar_select %p130, %s131, %s132
    %p136 = pneg %p130
    %p137 = scmp.eq.s32.totalorder %s11, 1
    %p138 = por %p136, %p137
    %p139 = scmp.ne.s32.totalorder %s131, %s134
    %p140 = scmp.eq.s32.totalorder %s11, 0
    %p141 = por %p139, %p140
    %p142 = scmp.ne.s32.totalorder %s131, %s134
    %p143 = scmp.eq.s32.totalorder %s16, 1
    %p144 = por %p142, %p143
    %p145 = scmp.ne.s32.totalorder %s134, %s135
    %p146 = scmp.eq.s32.totalorder %s16, 0
    %p147 = por %p145, %p146
    %p148 = scmp.ne.s32.totalorder %s134, %s135
    %p149 = scmp.eq.s32.totalorder %s17, 1
    %p150 = por %p148, %p149
    %p152 = scmp.ne.s32.totalorder %s135, %s151
    %p153 = scmp.eq.s32.totalorder %s17, 0
    %p154 = por %p152, %p153
    %p155 = scmp.le.s32.totalorder 1, %s11
    %p156 = scmp.lt.s32.totalorder %s11, 3
    %p157 = pnand %p155, %p156
    %p158 = pneg %p157
    // Predicated region
    $region9: #{cassva_forward.1} parent=5 // pred_check
      _
    $region10: #{cassva_forward.1} parent=5 // pred_check_branch
      %160 = sbr.rel (%p157) target = $region12
    $region11: #{cassva_forward.1} parent=5 // pred_region
      %s161 = ssub.s32 %s11, 1
      // Predicated region
      $region13: #{cassva_forward.1} parent=11 // pred_check
        %p162 = pneg %p58
      $region14: #{cassva_forward.1} parent=11 // pred_check_branch
        %164 = sbr.rel (%p162) target = $region16
      $region15: #{cassva_forward.1} parent=11 // pred_region
        _
      $region16: #{cassva_forward.1} parent=11 // pred_fallthru
        _
      // Predicated region
      $region17: #{cassva_forward.1} parent=11 // pred_check
        %p165 = pneg %p79
      $region18: #{cassva_forward.1} parent=11 // pred_check_branch
        %167 = sbr.rel (%p165) target = $region20
      $region19: #{cassva_forward.1} parent=11 // pred_region
        _
      $region20: #{cassva_forward.1} parent=11 // pred_fallthru
        _
      // Predicated region
      $region21: #{cassva_forward.1} parent=11 // pred_check
        %p168 = pneg %p100
      $region22: #{cassva_forward.1} parent=11 // pred_check_branch
        %170 = sbr.rel (%p168) target = $region24
      $region23: #{cassva_forward.1} parent=11 // pred_region
        _
      $region24: #{cassva_forward.1} parent=11 // pred_fallthru
        _
      // Predicated region
      $region25: #{cassva_forward.1} parent=11 // pred_check
        %p171 = pneg %p121
      $region26: #{cassva_forward.1} parent=11 // pred_check_branch
        %173 = sbr.rel (%p171) target = $region28
      $region27: #{cassva_forward.1} parent=11 // pred_region
        _
      $region28: #{cassva_forward.1} parent=11 // pred_fallthru
        _
    $region12: #{cassva_forward.1} parent=5 // pred_fallthru
      _
    %p174 = scmp.lt.s32.totalorder %s11, 2
    // Predicated region
    $region29: #{cassva_forward.1} parent=5 // pred_check
      %p175 = pneg %p174
    $region30: #{cassva_forward.1} parent=5 // pred_check_branch
      %177 = sbr.rel (%p175) target = $region32
    $region31: #{cassva_forward.1} parent=5 // pred_region
      // Predicated region
      $region33: #{cassva_forward.1} parent=31 // pred_check
        %p178 = pneg %p31
      $region34: #{cassva_forward.1} parent=31 // pred_check_branch
        %180 = sbr.rel (%p178) target = $region36
      $region35: #{cassva_forward.1} parent=31 // pred_region
        %p181 = scmp.lt.s32.totalorder %s11, 1
        %s182 = scalar_select %p181, %s11, 1
        %s183 = smul.addr %s182, 128
        %s184 = smul.addr %s183, 4
        %s185 = scalar_lea.vmem %s0, %s184
      $region36: #{cassva_forward.1} parent=31 // pred_fallthru
        _
    $region32: #{cassva_forward.1} parent=5 // pred_fallthru
      _
    %p186 = scmp.le.s32.totalorder 1, %s11
    %p187 = scmp.lt.s32.totalorder %s11, 3
    %p188 = pnand %p186, %p187
    %p189 = pneg %p188
    // Predicated region
    $region37: #{cassva_forward.1} parent=5 // pred_check
      _
    $region38: #{cassva_forward.1} parent=5 // pred_check_branch
      %191 = sbr.rel (%p188) target = $region40
    $region39: #{cassva_forward.1} parent=5 // pred_region
      %s192 = ssub.s32 %s11, 1
      %p193 = scmp.lt.s32.totalorder %s16, 1
      %s194 = scalar_select %p193, %s16, 1
      %s195 = smul.addr %s194, 128
      %s196 = smul.addr %s195, 4
      %s197 = scalar_lea.vmem %s0, %s196
      %p198 = pneg %p37
      %p199 = pneg %p34
      %p200 = pneg %p58
      %p201 = pneg %p55
      %p202 = pneg %p79
      %p203 = pneg %p76
      %p204 = pneg %p100
      %p205 = pneg %p97
      %p206 = pneg %p121
      %p207 = pneg %p118
      %p208 = pneg %p147
      %p209 = pneg %p144
      %p210 = scmp.lt.s32.totalorder %s16, 1
      %s211 = scalar_select %p210, %s16, 1
      %s212 = smul.addr %s211, 8
      %s213 = scalar_lea.vmem %s5, %s212
      %p214 = scmp.lt.s32.totalorder %s16, 1
      %s215 = scalar_select %p214, %s16, 1
      %s216 = smul.addr %s215, 128
      %s217 = smul.addr %s216, 4
      %s218 = scalar_lea.vmem %s0, %s217
      %p219 = scmp.lt.s32.totalorder %s16, 1
      %s220 = scalar_select %p219, %s16, 1
      %s221 = smul.addr %s220, 8
      %s222 = scalar_lea.vmem %s5, %s221
      %v225 = vld [vmem:[%s218] sm:$0xf]
      %v226 = vld [vmem:[%s218 + $0x4] sm:$0xf]
      %v227 = vld [vmem:[%s218 + $0x8] sm:$0xf]
      %v228 = vld [vmem:[%s218 + $0xc] sm:$0xf]
      %v229 = vld [vmem:[%s218 + $0x10] sm:$0xf]
      %v230 = vld [vmem:[%s218 + $0x14] sm:$0xf]
      %v231 = vld [vmem:[%s218 + $0x18] sm:$0xf]
      %v232 = vld [vmem:[%s218 + $0x1c] sm:$0xf]
      %v233 = vld [vmem:[%s218 + $0x20] sm:$0xf]
      %v234 = vld [vmem:[%s218 + $0x24] sm:$0xf]
      %v235 = vld [vmem:[%s218 + $0x28] sm:$0xf]
      %v236 = vld [vmem:[%s218 + $0x2c] sm:$0xf]
      %v237 = vld [vmem:[%s218 + $0x30] sm:$0xf]
      %v238 = vld [vmem:[%s218 + $0x34] sm:$0xf]
      %v239 = vld [vmem:[%s218 + $0x38] sm:$0xf]
      %v240 = vld [vmem:[%s218 + $0x3c] sm:$0xf]
      %v241 = vld [vmem:[%s218 + $0x40] sm:$0xf]
      %v242 = vld [vmem:[%s218 + $0x44] sm:$0xf]
      %v243 = vld [vmem:[%s218 + $0x48] sm:$0xf]
      %v244 = vld [vmem:[%s218 + $0x4c] sm:$0xf]
      %v245 = vld [vmem:[%s218 + $0x50] sm:$0xf]
      %v246 = vld [vmem:[%s218 + $0x54] sm:$0xf]
      %v247 = vld [vmem:[%s218 + $0x58] sm:$0xf]
      %v248 = vld [vmem:[%s218 + $0x5c] sm:$0xf]
      %v249 = vld [vmem:[%s218 + $0x60] sm:$0xf]
      %v250 = vld [vmem:[%s218 + $0x64] sm:$0xf]
      %v251 = vld [vmem:[%s218 + $0x68] sm:$0xf]
      %v252 = vld [vmem:[%s218 + $0x6c] sm:$0xf]
      %v253 = vld [vmem:[%s218 + $0x70] sm:$0xf]
      %v254 = vld [vmem:[%s218 + $0x74] sm:$0xf]
      %v255 = vld [vmem:[%s218 + $0x78] sm:$0xf]
      %v256 = vld [vmem:[%s218 + $0x7c] sm:$0xf]
      %v257 = vld [vmem:[%s218 + $0x80] sm:$0xf]
      %v258 = vld [vmem:[%s218 + $0x84] sm:$0xf]
      %v259 = vld [vmem:[%s218 + $0x88] sm:$0xf]
      %v260 = vld [vmem:[%s218 + $0x8c] sm:$0xf]
      %v261 = vld [vmem:[%s218 + $0x90] sm:$0xf]
      %v262 = vld [vmem:[%s218 + $0x94] sm:$0xf]
      %v263 = vld [vmem:[%s218 + $0x98] sm:$0xf]
      %v264 = vld [vmem:[%s218 + $0x9c] sm:$0xf]
      %v265 = vld [vmem:[%s218 + $0xa0] sm:$0xf]
      %v266 = vld [vmem:[%s218 + $0xa4] sm:$0xf]
      %v267 = vld [vmem:[%s218 + $0xa8] sm:$0xf]
      %v268 = vld [vmem:[%s218 + $0xac] sm:$0xf]
      %v269 = vld [vmem:[%s218 + $0xb0] sm:$0xf]
      %v270 = vld [vmem:[%s218 + $0xb4] sm:$0xf]
      %v271 = vld [vmem:[%s218 + $0xb8] sm:$0xf]
      %v272 = vld [vmem:[%s218 + $0xbc] sm:$0xf]
      %v273 = vld [vmem:[%s218 + $0xc0] sm:$0xf]
      %v274 = vld [vmem:[%s218 + $0xc4] sm:$0xf]
      %v275 = vld [vmem:[%s218 + $0xc8] sm:$0xf]
      %v276 = vld [vmem:[%s218 + $0xcc] sm:$0xf]
      %v277 = vld [vmem:[%s218 + $0xd0] sm:$0xf]
      %v278 = vld [vmem:[%s218 + $0xd4] sm:$0xf]
      %v279 = vld [vmem:[%s218 + $0xd8] sm:$0xf]
      %v280 = vld [vmem:[%s218 + $0xdc] sm:$0xf]
      %v281 = vld [vmem:[%s218 + $0xe0] sm:$0xf]
      %v282 = vld [vmem:[%s218 + $0xe4] sm:$0xf]
      %v283 = vld [vmem:[%s218 + $0xe8] sm:$0xf]
      %v284 = vld [vmem:[%s218 + $0xec] sm:$0xf]
      %v285 = vld [vmem:[%s218 + $0xf0] sm:$0xf]
      %v286 = vld [vmem:[%s218 + $0xf4] sm:$0xf]
      %v287 = vld [vmem:[%s218 + $0xf8] sm:$0xf]
      %v288 = vld [vmem:[%s218 + $0xfc] sm:$0xf]
      %v289 = vld [vmem:[%s218 + $0x100] sm:$0xf]
      %v290 = vld [vmem:[%s218 + $0x104] sm:$0xf]
      %v291 = vld [vmem:[%s218 + $0x108] sm:$0xf]
      %v292 = vld [vmem:[%s218 + $0x10c] sm:$0xf]
      %v293 = vld [vmem:[%s218 + $0x110] sm:$0xf]
      %v294 = vld [vmem:[%s218 + $0x114] sm:$0xf]
      %v295 = vld [vmem:[%s218 + $0x118] sm:$0xf]
      %v296 = vld [vmem:[%s218 + $0x11c] sm:$0xf]
      %v297 = vld [vmem:[%s218 + $0x120] sm:$0xf]
      %v298 = vld [vmem:[%s218 + $0x124] sm:$0xf]
      %v299 = vld [vmem:[%s218 + $0x128] sm:$0xf]
      %v300 = vld [vmem:[%s218 + $0x12c] sm:$0xf]
      %v301 = vld [vmem:[%s218 + $0x130] sm:$0xf]
      %v302 = vld [vmem:[%s218 + $0x134] sm:$0xf]
      %v303 = vld [vmem:[%s218 + $0x138] sm:$0xf]
      %v304 = vld [vmem:[%s218 + $0x13c] sm:$0xf]
      %v305 = vld [vmem:[%s218 + $0x140] sm:$0xf]
      %v306 = vld [vmem:[%s218 + $0x144] sm:$0xf]
      %v307 = vld [vmem:[%s218 + $0x148] sm:$0xf]
      %v308 = vld [vmem:[%s218 + $0x14c] sm:$0xf]
      %v309 = vld [vmem:[%s218 + $0x150] sm:$0xf]
      %v310 = vld [vmem:[%s218 + $0x154] sm:$0xf]
      %v311 = vld [vmem:[%s218 + $0x158] sm:$0xf]
      %v312 = vld [vmem:[%s218 + $0x15c] sm:$0xf]
      %v313 = vld [vmem:[%s218 + $0x160] sm:$0xf]
      %v314 = vld [vmem:[%s218 + $0x164] sm:$0xf]
      %v315 = vld [vmem:[%s218 + $0x168] sm:$0xf]
      %v316 = vld [vmem:[%s218 + $0x16c] sm:$0xf]
      %v317 = vld [vmem:[%s218 + $0x170] sm:$0xf]
      %v318 = vld [vmem:[%s218 + $0x174] sm:$0xf]
      %v319 = vld [vmem:[%s218 + $0x178] sm:$0xf]
      %v320 = vld [vmem:[%s218 + $0x17c] sm:$0xf]
      %v321 = vld [vmem:[%s218 + $0x180] sm:$0xf]
      %v322 = vld [vmem:[%s218 + $0x184] sm:$0xf]
      %v323 = vld [vmem:[%s218 + $0x188] sm:$0xf]
      %v324 = vld [vmem:[%s218 + $0x18c] sm:$0xf]
      %v325 = vld [vmem:[%s218 + $0x190] sm:$0xf]
      %v326 = vld [vmem:[%s218 + $0x194] sm:$0xf]
      %v327 = vld [vmem:[%s218 + $0x198] sm:$0xf]
      %v328 = vld [vmem:[%s218 + $0x19c] sm:$0xf]
      %v329 = vld [vmem:[%s218 + $0x1a0] sm:$0xf]
      %v330 = vld [vmem:[%s218 + $0x1a4] sm:$0xf]
      %v331 = vld [vmem:[%s218 + $0x1a8] sm:$0xf]
      %v332 = vld [vmem:[%s218 + $0x1ac] sm:$0xf]
      %v333 = vld [vmem:[%s218 + $0x1b0] sm:$0xf]
      %v334 = vld [vmem:[%s218 + $0x1b4] sm:$0xf]
      %v335 = vld [vmem:[%s218 + $0x1b8] sm:$0xf]
      %v336 = vld [vmem:[%s218 + $0x1bc] sm:$0xf]
      %v337 = vld [vmem:[%s218 + $0x1c0] sm:$0xf]
      %v338 = vld [vmem:[%s218 + $0x1c4] sm:$0xf]
      %v339 = vld [vmem:[%s218 + $0x1c8] sm:$0xf]
      %v340 = vld [vmem:[%s218 + $0x1cc] sm:$0xf]
      %v341 = vld [vmem:[%s218 + $0x1d0] sm:$0xf]
      %v342 = vld [vmem:[%s218 + $0x1d4] sm:$0xf]
      %v343 = vld [vmem:[%s218 + $0x1d8] sm:$0xf]
      %v344 = vld [vmem:[%s218 + $0x1dc] sm:$0xf]
      %v345 = vld [vmem:[%s218 + $0x1e0] sm:$0xf]
      %v346 = vld [vmem:[%s218 + $0x1e4] sm:$0xf]
      %v347 = vld [vmem:[%s218 + $0x1e8] sm:$0xf]
      %v348 = vld [vmem:[%s218 + $0x1ec] sm:$0xf]
      %v349 = vld [vmem:[%s218 + $0x1f0] sm:$0xf]
      %v350 = vld [vmem:[%s218 + $0x1f4] sm:$0xf]
      %v351 = vld [vmem:[%s218 + $0x1f8] sm:$0xf]
      %v352 = vld [vmem:[%s218 + $0x1fc] sm:$0xf]
      %v353 = vld [vmem:[%s1] sm:$0xf]
      %v354 = vld [vmem:[%s1 + $0x4] sm:$0xf]
      %v355 = vld [vmem:[%s1 + $0x8] sm:$0xf]
      %v356 = vld [vmem:[%s1 + $0xc] sm:$0xf]
      %v357 = vld [vmem:[%s2] sm:$0x1]
      %v359 = vlaneseq
      %v360 = vshrl.u32 %v359, 7
      %v361 = vsub.s32 0, %v360
      %v362 = vrot.slane %v357, %v361
      %v492 = vunpack.c.l.b16 %v225
      %v493 = vunpack.c.l.b16 %v226
      %v494 = vunpack.c.l.b16 %v227
      %v495 = vunpack.c.l.b16 %v228
      %v496 = vunpack.c.l.b16 %v229
      %v497 = vunpack.c.l.b16 %v230
      %v498 = vunpack.c.l.b16 %v231
      %v499 = vunpack.c.l.b16 %v232
      %v500 = vunpack.c.l.b16 %v233
      %v501 = vunpack.c.l.b16 %v234
      %v502 = vunpack.c.l.b16 %v235
      %v503 = vunpack.c.l.b16 %v236
      %v504 = vunpack.c.l.b16 %v237
      %v505 = vunpack.c.l.b16 %v238
      %v506 = vunpack.c.l.b16 %v239
      %v507 = vunpack.c.l.b16 %v240
      %v508 = vunpack.c.l.b16 %v241
      %v509 = vunpack.c.l.b16 %v242
      %v510 = vunpack.c.l.b16 %v243
      %v511 = vunpack.c.l.b16 %v244
      %v512 = vunpack.c.l.b16 %v245
      %v513 = vunpack.c.l.b16 %v246
      %v514 = vunpack.c.l.b16 %v247
      %v515 = vunpack.c.l.b16 %v248
      %v516 = vunpack.c.l.b16 %v249
      %v517 = vunpack.c.l.b16 %v250
      %v518 = vunpack.c.l.b16 %v251
      %v519 = vunpack.c.l.b16 %v252
      %v520 = vunpack.c.l.b16 %v253
      %v521 = vunpack.c.l.b16 %v254
      %v522 = vunpack.c.l.b16 %v255
      %v523 = vunpack.c.l.b16 %v256
      %v524 = vunpack.c.l.b16 %v257
      %v525 = vunpack.c.l.b16 %v258
      %v526 = vunpack.c.l.b16 %v259
      %v527 = vunpack.c.l.b16 %v260
      %v528 = vunpack.c.l.b16 %v261
      %v529 = vunpack.c.l.b16 %v262
      %v530 = vunpack.c.l.b16 %v263
      %v531 = vunpack.c.l.b16 %v264
      %v532 = vunpack.c.l.b16 %v265
      %v533 = vunpack.c.l.b16 %v266
      %v534 = vunpack.c.l.b16 %v267
      %v535 = vunpack.c.l.b16 %v268
      %v536 = vunpack.c.l.b16 %v269
      %v537 = vunpack.c.l.b16 %v270
      %v538 = vunpack.c.l.b16 %v271
      %v539 = vunpack.c.l.b16 %v272
      %v540 = vunpack.c.l.b16 %v273
      %v541 = vunpack.c.l.b16 %v274
      %v542 = vunpack.c.l.b16 %v275
      %v543 = vunpack.c.l.b16 %v276
      %v544 = vunpack.c.l.b16 %v277
      %v545 = vunpack.c.l.b16 %v278
      %v546 = vunpack.c.l.b16 %v279
      %v547 = vunpack.c.l.b16 %v280
      %v548 = vunpack.c.l.b16 %v281
      %v549 = vunpack.c.l.b16 %v282
      %v550 = vunpack.c.l.b16 %v283
      %v551 = vunpack.c.l.b16 %v284
      %v552 = vunpack.c.l.b16 %v285
      %v553 = vunpack.c.l.b16 %v286
      %v554 = vunpack.c.l.b16 %v287
      %v555 = vunpack.c.l.b16 %v288
      %v556 = vunpack.c.l.b16 %v289
      %v557 = vunpack.c.l.b16 %v290
      %v558 = vunpack.c.l.b16 %v291
      %v559 = vunpack.c.l.b16 %v292
      %v560 = vunpack.c.l.b16 %v293
      %v561 = vunpack.c.l.b16 %v294
      %v562 = vunpack.c.l.b16 %v295
      %v563 = vunpack.c.l.b16 %v296
      %v564 = vunpack.c.l.b16 %v297
      %v565 = vunpack.c.l.b16 %v298
      %v566 = vunpack.c.l.b16 %v299
      %v567 = vunpack.c.l.b16 %v300
      %v568 = vunpack.c.l.b16 %v301
      %v569 = vunpack.c.l.b16 %v302
      %v570 = vunpack.c.l.b16 %v303
      %v571 = vunpack.c.l.b16 %v304
      %v572 = vunpack.c.l.b16 %v305
      %v573 = vunpack.c.l.b16 %v306
      %v574 = vunpack.c.l.b16 %v307
      %v575 = vunpack.c.l.b16 %v308
      %v576 = vunpack.c.l.b16 %v309
      %v577 = vunpack.c.l.b16 %v310
      %v578 = vunpack.c.l.b16 %v311
      %v579 = vunpack.c.l.b16 %v312
      %v580 = vunpack.c.l.b16 %v313
      %v581 = vunpack.c.l.b16 %v314
      %v582 = vunpack.c.l.b16 %v315
      %v583 = vunpack.c.l.b16 %v316
      %v584 = vunpack.c.l.b16 %v317
      %v585 = vunpack.c.l.b16 %v318
      %v586 = vunpack.c.l.b16 %v319
      %v587 = vunpack.c.l.b16 %v320
      %v588 = vunpack.c.l.b16 %v321
      %v589 = vunpack.c.l.b16 %v322
      %v590 = vunpack.c.l.b16 %v323
      %v591 = vunpack.c.l.b16 %v324
      %v592 = vunpack.c.l.b16 %v325
      %v593 = vunpack.c.l.b16 %v326
      %v594 = vunpack.c.l.b16 %v327
      %v595 = vunpack.c.l.b16 %v328
      %v596 = vunpack.c.l.b16 %v329
      %v597 = vunpack.c.l.b16 %v330
      %v598 = vunpack.c.l.b16 %v331
      %v599 = vunpack.c.l.b16 %v332
      %v600 = vunpack.c.l.b16 %v333
      %v601 = vunpack.c.l.b16 %v334
      %v602 = vunpack.c.l.b16 %v335
      %v603 = vunpack.c.l.b16 %v336
      %v604 = vunpack.c.l.b16 %v337
      %v605 = vunpack.c.l.b16 %v338
      %v606 = vunpack.c.l.b16 %v339
      %v607 = vunpack.c.l.b16 %v340
      %v608 = vunpack.c.l.b16 %v341
      %v609 = vunpack.c.l.b16 %v342
      %v610 = vunpack.c.l.b16 %v343
      %v611 = vunpack.c.l.b16 %v344
      %v612 = vunpack.c.l.b16 %v345
      %v613 = vunpack.c.l.b16 %v346
      %v614 = vunpack.c.l.b16 %v347
      %v615 = vunpack.c.l.b16 %v348
      %v616 = vunpack.c.l.b16 %v349
      %v617 = vunpack.c.l.b16 %v350
      %v618 = vunpack.c.l.b16 %v351
      %v619 = vunpack.c.l.b16 %v352
      %v620 = vpack.c.b16 %v493, %v492
      %v621 = vpack.c.b16 %v495, %v494
      %v622 = vpack.c.b16 %v497, %v496
      %v623 = vpack.c.b16 %v499, %v498
      %v624 = vpack.c.b16 %v501, %v500
      %v625 = vpack.c.b16 %v503, %v502
      %v626 = vpack.c.b16 %v505, %v504
      %v627 = vpack.c.b16 %v507, %v506
      %v628 = vpack.c.b16 %v509, %v508
      %v629 = vpack.c.b16 %v511, %v510
      %v630 = vpack.c.b16 %v513, %v512
      %v631 = vpack.c.b16 %v515, %v514
      %v632 = vpack.c.b16 %v517, %v516
      %v633 = vpack.c.b16 %v519, %v518
      %v634 = vpack.c.b16 %v521, %v520
      %v635 = vpack.c.b16 %v523, %v522
      %v636 = vpack.c.b16 %v525, %v524
      %v637 = vpack.c.b16 %v527, %v526
      %v638 = vpack.c.b16 %v529, %v528
      %v639 = vpack.c.b16 %v531, %v530
      %v640 = vpack.c.b16 %v533, %v532
      %v641 = vpack.c.b16 %v535, %v534
      %v642 = vpack.c.b16 %v537, %v536
      %v643 = vpack.c.b16 %v539, %v538
      %v644 = vpack.c.b16 %v541, %v540
      %v645 = vpack.c.b16 %v543, %v542
      %v646 = vpack.c.b16 %v545, %v544
      %v647 = vpack.c.b16 %v547, %v546
      %v648 = vpack.c.b16 %v549, %v548
      %v649 = vpack.c.b16 %v551, %v550
      %v650 = vpack.c.b16 %v553, %v552
      %v651 = vpack.c.b16 %v555, %v554
      %v652 = vpack.c.b16 %v557, %v556
      %v653 = vpack.c.b16 %v559, %v558
      %v654 = vpack.c.b16 %v561, %v560
      %v655 = vpack.c.b16 %v563, %v562
      %v656 = vpack.c.b16 %v565, %v564
      %v657 = vpack.c.b16 %v567, %v566
      %v658 = vpack.c.b16 %v569, %v568
      %v659 = vpack.c.b16 %v571, %v570
      %v660 = vpack.c.b16 %v573, %v572
      %v661 = vpack.c.b16 %v575, %v574
      %v662 = vpack.c.b16 %v577, %v576
      %v663 = vpack.c.b16 %v579, %v578
      %v664 = vpack.c.b16 %v581, %v580
      %v665 = vpack.c.b16 %v583, %v582
      %v666 = vpack.c.b16 %v585, %v584
      %v667 = vpack.c.b16 %v587, %v586
      %v668 = vpack.c.b16 %v589, %v588
      %v669 = vpack.c.b16 %v591, %v590
      %v670 = vpack.c.b16 %v593, %v592
      %v671 = vpack.c.b16 %v595, %v594
      %v672 = vpack.c.b16 %v597, %v596
      %v673 = vpack.c.b16 %v599, %v598
      %v674 = vpack.c.b16 %v601, %v600
      %v675 = vpack.c.b16 %v603, %v602
      %v676 = vpack.c.b16 %v605, %v604
      %v677 = vpack.c.b16 %v607, %v606
      %v678 = vpack.c.b16 %v609, %v608
      %v679 = vpack.c.b16 %v611, %v610
      %v680 = vpack.c.b16 %v613, %v612
      %v681 = vpack.c.b16 %v615, %v614
      %v682 = vpack.c.b16 %v617, %v616
      %v683 = vpack.c.b16 %v619, %v618
      %v688 = vunpack.c.l.b16 %v353
      %v689 = vunpack.c.l.b16 %v354
      %v690 = vunpack.c.l.b16 %v355
      %v691 = vunpack.c.l.b16 %v356
      %v692 = vpack.c.b16 %v689, %v688
      %v693 = vpack.c.b16 %v691, %v690
      %vm696 = vcmask 261120
      %v698 = vsel %vm696, %v620, 0
      %v701 = vsel %vm696, %v621, 0
      %v704 = vsel %vm696, %v622, 0
      %v707 = vsel %vm696, %v623, 0
      %v710 = vsel %vm696, %v624, 0
      %v713 = vsel %vm696, %v625, 0
      %v716 = vsel %vm696, %v626, 0
      %v719 = vsel %vm696, %v627, 0
      %v722 = vsel %vm696, %v628, 0
      %v725 = vsel %vm696, %v629, 0
      %v728 = vsel %vm696, %v630, 0
      %v731 = vsel %vm696, %v631, 0
      %v734 = vsel %vm696, %v632, 0
      %v737 = vsel %vm696, %v633, 0
      %v740 = vsel %vm696, %v634, 0
      %v743 = vsel %vm696, %v635, 0
      %v746 = vsel %vm696, %v636, 0
      %v749 = vsel %vm696, %v637, 0
      %v752 = vsel %vm696, %v638, 0
      %v755 = vsel %vm696, %v639, 0
      %v758 = vsel %vm696, %v640, 0
      %v761 = vsel %vm696, %v641, 0
      %v764 = vsel %vm696, %v642, 0
      %v767 = vsel %vm696, %v643, 0
      %v770 = vsel %vm696, %v644, 0
      %v773 = vsel %vm696, %v645, 0
      %v776 = vsel %vm696, %v646, 0
      %v779 = vsel %vm696, %v647, 0
      %v782 = vsel %vm696, %v648, 0
      %v785 = vsel %vm696, %v649, 0
      %v788 = vsel %vm696, %v650, 0
      %v791 = vsel %vm696, %v651, 0
      %v794 = vsel %vm696, %v652, 0
      %v797 = vsel %vm696, %v653, 0
      %v800 = vsel %vm696, %v654, 0
      %v803 = vsel %vm696, %v655, 0
      %v806 = vsel %vm696, %v656, 0
      %v809 = vsel %vm696, %v657, 0
      %v812 = vsel %vm696, %v658, 0
      %v815 = vsel %vm696, %v659, 0
      %v818 = vsel %vm696, %v660, 0
      %v821 = vsel %vm696, %v661, 0
      %v824 = vsel %vm696, %v662, 0
      %v827 = vsel %vm696, %v663, 0
      %v830 = vsel %vm696, %v664, 0
      %v833 = vsel %vm696, %v665, 0
      %v836 = vsel %vm696, %v666, 0
      %v839 = vsel %vm696, %v667, 0
      %v842 = vsel %vm696, %v668, 0
      %v845 = vsel %vm696, %v669, 0
      %v848 = vsel %vm696, %v670, 0
      %v851 = vsel %vm696, %v671, 0
      %v854 = vsel %vm696, %v672, 0
      %v857 = vsel %vm696, %v673, 0
      %v860 = vsel %vm696, %v674, 0
      %v863 = vsel %vm696, %v675, 0
      %v866 = vsel %vm696, %v676, 0
      %v869 = vsel %vm696, %v677, 0
      %v872 = vsel %vm696, %v678, 0
      %v875 = vsel %vm696, %v679, 0
      %v878 = vsel %vm696, %v680, 0
      %v881 = vsel %vm696, %v681, 0
      %v884 = vsel %vm696, %v682, 0
      %v887 = vsel %vm696, %v683, 0
      %889 = vmatprep.subr.bf16.mxu0 0
      %890 = vmatpush1.bf16.msra.mxu0 %v692
      %891 = vmatprep.subr.bf16.mxu0 0
      %892 = vmatpush1.bf16.msra.mxu0 %v693
      %893 = vmatprep.subr.bf16.mxu0 0
      %894 = vmatpush1.bf16.msra.mxu0 0
      %895 = vmatprep.subr.bf16.mxu0 0
      %896 = vmatpush1.bf16.msra.mxu0 0
      %897 = vmatprep.subr.bf16.mxu0 0
      %898 = vmatpush1.bf16.msra.mxu0 0
      %899 = vmatprep.subr.bf16.mxu0 0
      %900 = vmatpush1.bf16.msra.mxu0 0
      %901 = vmatprep.subr.bf16.mxu0 0
      %902 = vmatpush1.bf16.msra.mxu0 0
      %903 = vmatprep.subr.bf16.mxu0 0
      %904 = vmatpush1.bf16.msra.mxu0 0
      %905 = vmatprep.subr.bf16.mxu0 0
      %906 = vmatpush1.bf16.msra.mxu0 0
      %907 = vmatprep.subr.bf16.mxu0 0
      %908 = vmatpush1.bf16.msra.mxu0 0
      %909 = vmatprep.subr.bf16.mxu0 0
      %910 = vmatpush1.bf16.msra.mxu0 0
      %911 = vmatprep.subr.bf16.mxu0 0
      %912 = vmatpush1.bf16.msra.mxu0 0
      %913 = vmatprep.subr.bf16.mxu0 0
      %914 = vmatpush1.bf16.msra.mxu0 0
      %915 = vmatprep.subr.bf16.mxu0 0
      %916 = vmatpush1.bf16.msra.mxu0 0
      %917 = vmatprep.subr.bf16.mxu0 0
      %918 = vmatpush1.bf16.msra.mxu0 0
      %919 = vmatprep.subr.bf16.mxu0 0
      %920 = vmatpush1.bf16.msra.mxu0 0
      %921 = vmatprep.mubr.bf16.mxu0 0
      %922 = vmatmul.mubr.bf16.gmra.mrb[0].mxu0 %v698
      %v923 = vpop.f32.mrb[0].mxu0
      %v924 = vadd.f32 %v362, %v923
      %v925 = vpop.f32.mrb[0].mxu0
      %v926 = vpop.f32.mrb[0].mxu0
      %v927 = vadd.f32 %v362, %v926
      %v928 = vpop.f32.mrb[0].mxu0
      %929 = vmatprep.mubr.bf16.mxu0 0
      %930 = vmatmul.mubr.bf16.gmra.mrb[0].mxu0 %v701
      %v931 = vpop.f32.mrb[0].mxu0
      %v932 = vadd.f32 %v362, %v931
      %v933 = vpop.f32.mrb[0].mxu0
      %v934 = vpop.f32.mrb[0].mxu0
      %v935 = vadd.f32 %v362, %v934
      %v936 = vpop.f32.mrb[0].mxu0
      %937 = vmatprep.mubr.bf16.mxu0 0
      %938 = vmatmul.mubr.bf16.gmra.mrb[0].mxu0 %v704
      %v939 = vpop.f32.mrb[0].mxu0
      %v940 = vadd.f32 %v362, %v939
      %v941 = vpop.f32.mrb[0].mxu0
      %v942 = vpop.f32.mrb[0].mxu0
      %v943 = vadd.f32 %v362, %v942
      %v944 = vpop.f32.mrb[0].mxu0
      %945 = vmatprep.mubr.bf16.mxu0 0
      %946 = vmatmul.mubr.bf16.gmra.mrb[0].mxu0 %v707
      %v947 = vpop.f32.mrb[0].mxu0
      %v948 = vadd.f32 %v362, %v947
      %v949 = vpop.f32.mrb[0].mxu0
      %v950 = vpop.f32.mrb[0].mxu0
      %v951 = vadd.f32 %v362, %v950
      %v952 = vpop.f32.mrb[0].mxu0
      %953 = vmatprep.mubr.bf16.mxu0 0
      %954 = vmatmul.mubr.bf16.gmra.mrb[0].mxu0 %v710
      %v955 = vpop.f32.mrb[0].mxu0
      %v956 = vadd.f32 %v362, %v955
      %v957 = vpop.f32.mrb[0].mxu0
      %v958 = vpop.f32.mrb[0].mxu0
      %v959 = vadd.f32 %v362, %v958
      %v960 = vpop.f32.mrb[0].mxu0
      %961 = vmatprep.mubr.bf16.mxu0 0
      %962 = vmatmul.mubr.bf16.gmra.mrb[0].mxu0 %v713
      %v963 = vpop.f32.mrb[0].mxu0
      %v964 = vadd.f32 %v362, %v963
      %v965 = vpop.f32.mrb[0].mxu0
      %v966 = vpop.f32.mrb[0].mxu0
      %v967 = vadd.f32 %v362, %v966
      %v968 = vpop.f32.mrb[0].mxu0
      %969 = vmatprep.mubr.bf16.mxu0 0
      %970 = vmatmul.mubr.bf16.gmra.mrb[0].mxu0 %v716
      %v971 = vpop.f32.mrb[0].mxu0
      %v972 = vadd.f32 %v362, %v971
      %v973 = vpop.f32.mrb[0].mxu0
      %v974 = vpop.f32.mrb[0].mxu0
      %v975 = vadd.f32 %v362, %v974
      %v976 = vpop.f32.mrb[0].mxu0
      %977 = vmatprep.mubr.bf16.mxu0 0
      %978 = vmatmul.mubr.bf16.gmra.mrb[0].mxu0 %v719
      %v979 = vpop.f32.mrb[0].mxu0
      %v980 = vadd.f32 %v362, %v979
      %v981 = vpop.f32.mrb[0].mxu0
      %v982 = vpop.f32.mrb[0].mxu0
      %v983 = vadd.f32 %v362, %v982
      %v984 = vpop.f32.mrb[0].mxu0
      %985 = vmatprep.mubr.bf16.mxu0 0
      %986 = vmatmul.mubr.bf16.gmra.mrb[0].mxu0 %v722
      %v987 = vpop.f32.mrb[0].mxu0
      %v988 = vadd.f32 %v362, %v987
      %v989 = vpop.f32.mrb[0].mxu0
      %v990 = vpop.f32.mrb[0].mxu0
      %v991 = vadd.f32 %v362, %v990
      %v992 = vpop.f32.mrb[0].mxu0
      %993 = vmatprep.mubr.bf16.mxu0 0
      %994 = vmatmul.mubr.bf16.gmra.mrb[0].mxu0 %v725
      %v995 = vpop.f32.mrb[0].mxu0
      %v996 = vadd.f32 %v362, %v995
      %v997 = vpop.f32.mrb[0].mxu0
      %v998 = vpop.f32.mrb[0].mxu0
      %v999 = vadd.f32 %v362, %v998
      %v1000 = vpop.f32.mrb[0].mxu0
      %1001 = vmatprep.mubr.bf16.mxu0 0
      %1002 = vmatmul.mubr.bf16.gmra.mrb[0].mxu0 %v728
      %v1003 = vpop.f32.mrb[0].mxu0
      %v1004 = vadd.f32 %v362, %v1003
      %v1005 = vpop.f32.mrb[0].mxu0
      %v1006 = vpop.f32.mrb[0].mxu0
      %v1007 = vadd.f32 %v362, %v1006
      %v1008 = vpop.f32.mrb[0].mxu0
      %1009 = vmatprep.mubr.bf16.mxu0 0
      %1010 = vmatmul.mubr.bf16.gmra.mrb[0].mxu0 %v731
      %v1011 = vpop.f32.mrb[0].mxu0
      %v1012 = vadd.f32 %v362, %v1011
      %v1013 = vpop.f32.mrb[0].mxu0
      %v1014 = vpop.f32.mrb[0].mxu0
      %v1015 = vadd.f32 %v362, %v1014
      %v1016 = vpop.f32.mrb[0].mxu0
      %1017 = vmatprep.mubr.bf16.mxu0 0
      %1018 = vmatmul.mubr.bf16.gmra.mrb[0].mxu0 %v734
      %v1019 = vpop.f32.mrb[0].mxu0
      %v1020 = vadd.f32 %v362, %v1019
      %v1021 = vpop.f32.mrb[0].mxu0
      %v1022 = vpop.f32.mrb[0].mxu0
      %v1023 = vadd.f32 %v362, %v1022
      %v1024 = vpop.f32.mrb[0].mxu0
      %1025 = vmatprep.mubr.bf16.mxu0 0
      %1026 = vmatmul.mubr.bf16.gmra.mrb[0].mxu0 %v737
      %v1027 = vpop.f32.mrb[0].mxu0
      %v1028 = vadd.f32 %v362, %v1027
      %v1029 = vpop.f32.mrb[0].mxu0
      %v1030 = vpop.f32.mrb[0].mxu0
      %v1031 = vadd.f32 %v362, %v1030
      %v1032 = vpop.f32.mrb[0].mxu0
      %1033 = vmatprep.mubr.bf16.mxu0 0
      %1034 = vmatmul.mubr.bf16.gmra.mrb[0].mxu0 %v740
      %v1035 = vpop.f32.mrb[0].mxu0
      %v1036 = vadd.f32 %v362, %v1035
      %v1037 = vpop.f32.mrb[0].mxu0
      %v1038 = vpop.f32.mrb[0].mxu0
      %v1039 = vadd.f32 %v362, %v1038
      %v1040 = vpop.f32.mrb[0].mxu0
      %1041 = vmatprep.mubr.bf16.mxu0 0
      %1042 = vmatmul.mubr.bf16.gmra.mrb[0].mxu0 %v743
      %v1043 = vpop.f32.mrb[0].mxu0
      %v1044 = vadd.f32 %v362, %v1043
      %v1045 = vpop.f32.mrb[0].mxu0
      %v1046 = vpop.f32.mrb[0].mxu0
      %v1047 = vadd.f32 %v362, %v1046
      %v1048 = vpop.f32.mrb[0].mxu0
      %1049 = vmatprep.mubr.bf16.mxu0 0
      %1050 = vmatmul.mubr.bf16.gmra.mrb[0].mxu0 %v746
      %v1051 = vpop.f32.mrb[0].mxu0
      %v1052 = vadd.f32 %v362, %v1051
      %v1053 = vpop.f32.mrb[0].mxu0
      %v1054 = vpop.f32.mrb[0].mxu0
      %v1055 = vadd.f32 %v362, %v1054
      %v1056 = vpop.f32.mrb[0].mxu0
      %1057 = vmatprep.mubr.bf16.mxu0 0
      %1058 = vmatmul.mubr.bf16.gmra.mrb[0].mxu0 %v749
      %v1059 = vpop.f32.mrb[0].mxu0
      %v1060 = vadd.f32 %v362, %v1059
      %v1061 = vpop.f32.mrb[0].mxu0
      %v1062 = vpop.f32.mrb[0].mxu0
      %v1063 = vadd.f32 %v362, %v1062
      %v1064 = vpop.f32.mrb[0].mxu0
      %1065 = vmatprep.mubr.bf16.mxu0 0
      %1066 = vmatmul.mubr.bf16.gmra.mrb[0].mxu0 %v752
      %v1067 = vpop.f32.mrb[0].mxu0
      %v1068 = vadd.f32 %v362, %v1067
      %v1069 = vpop.f32.mrb[0].mxu0
      %v1070 = vpop.f32.mrb[0].mxu0
      %v1071 = vadd.f32 %v362, %v1070
      %v1072 = vpop.f32.mrb[0].mxu0
      %1073 = vmatprep.mubr.bf16.mxu0 0
      %1074 = vmatmul.mubr.bf16.gmra.mrb[0].mxu0 %v755
      %v1075 = vpop.f32.mrb[0].mxu0
      %v1076 = vadd.f32 %v362, %v1075
      %v1077 = vpop.f32.mrb[0].mxu0
      %v1078 = vpop.f32.mrb[0].mxu0
      %v1079 = vadd.f32 %v362, %v1078
      %v1080 = vpop.f32.mrb[0].mxu0
      %1081 = vmatprep.mubr.bf16.mxu0 0
      %1082 = vmatmul.mubr.bf16.gmra.mrb[0].mxu0 %v758
      %v1083 = vpop.f32.mrb[0].mxu0
      %v1084 = vadd.f32 %v362, %v1083
      %v1085 = vpop.f32.mrb[0].mxu0
      %v1086 = vpop.f32.mrb[0].mxu0
      %v1087 = vadd.f32 %v362, %v1086
      %v1088 = vpop.f32.mrb[0].mxu0
      %1089 = vmatprep.mubr.bf16.mxu0 0
      %1090 = vmatmul.mubr.bf16.gmra.mrb[0].mxu0 %v761
      %v1091 = vpop.f32.mrb[0].mxu0
      %v1092 = vadd.f32 %v362, %v1091
      %v1093 = vpop.f32.mrb[0].mxu0
      %v1094 = vpop.f32.mrb[0].mxu0
      %v1095 = vadd.f32 %v362, %v1094
      %v1096 = vpop.f32.mrb[0].mxu0
      %1097 = vmatprep.mubr.bf16.mxu0 0
      %1098 = vmatmul.mubr.bf16.gmra.mrb[0].mxu0 %v764
      %v1099 = vpop.f32.mrb[0].mxu0
      %v1100 = vadd.f32 %v362, %v1099
      %v1101 = vpop.f32.mrb[0].mxu0
      %v1102 = vpop.f32.mrb[0].mxu0
      %v1103 = vadd.f32 %v362, %v1102
      %v1104 = vpop.f32.mrb[0].mxu0
      %1105 = vmatprep.mubr.bf16.mxu0 0
      %1106 = vmatmul.mubr.bf16.gmra.mrb[0].mxu0 %v767
      %v1107 = vpop.f32.mrb[0].mxu0
      %v1108 = vadd.f32 %v362, %v1107
      %v1109 = vpop.f32.mrb[0].mxu0
      %v1110 = vpop.f32.mrb[0].mxu0
      %v1111 = vadd.f32 %v362, %v1110
      %v1112 = vpop.f32.mrb[0].mxu0
      %1113 = vmatprep.mubr.bf16.mxu0 0
      %1114 = vmatmul.mubr.bf16.gmra.mrb[0].mxu0 %v770
      %v1115 = vpop.f32.mrb[0].mxu0
      %v1116 = vadd.f32 %v362, %v1115
      %v1117 = vpop.f32.mrb[0].mxu0
      %v1118 = vpop.f32.mrb[0].mxu0
      %v1119 = vadd.f32 %v362, %v1118
      %v1120 = vpop.f32.mrb[0].mxu0
      %1121 = vmatprep.mubr.bf16.mxu0 0
      %1122 = vmatmul.mubr.bf16.gmra.mrb[0].mxu0 %v773
      %v1123 = vpop.f32.mrb[0].mxu0
      %v1124 = vadd.f32 %v362, %v1123
      %v1125 = vpop.f32.mrb[0].mxu0
      %v1126 = vpop.f32.mrb[0].mxu0
      %v1127 = vadd.f32 %v362, %v1126
      %v1128 = vpop.f32.mrb[0].mxu0
      %1129 = vmatprep.mubr.bf16.mxu0 0
      %1130 = vmatmul.mubr.bf16.gmra.mrb[0].mxu0 %v776
      %v1131 = vpop.f32.mrb[0].mxu0
      %v1132 = vadd.f32 %v362, %v1131
      %v1133 = vpop.f32.mrb[0].mxu0
      %v1134 = vpop.f32.mrb[0].mxu0
      %v1135 = vadd.f32 %v362, %v1134
      %v1136 = vpop.f32.mrb[0].mxu0
      %1137 = vmatprep.mubr.bf16.mxu0 0
      %1138 = vmatmul.mubr.bf16.gmra.mrb[0].mxu0 %v779
      %v1139 = vpop.f32.mrb[0].mxu0
      %v1140 = vadd.f32 %v362, %v1139
      %v1141 = vpop.f32.mrb[0].mxu0
      %v1142 = vpop.f32.mrb[0].mxu0
      %v1143 = vadd.f32 %v362, %v1142
      %v1144 = vpop.f32.mrb[0].mxu0
      %1145 = vmatprep.mubr.bf16.mxu0 0
      %1146 = vmatmul.mubr.bf16.gmra.mrb[0].mxu0 %v782
      %v1147 = vpop.f32.mrb[0].mxu0
      %v1148 = vadd.f32 %v362, %v1147
      %v1149 = vpop.f32.mrb[0].mxu0
      %v1150 = vpop.f32.mrb[0].mxu0
      %v1151 = vadd.f32 %v362, %v1150
      %v1152 = vpop.f32.mrb[0].mxu0
      %1153 = vmatprep.mubr.bf16.mxu0 0
      %1154 = vmatmul.mubr.bf16.gmra.mrb[0].mxu0 %v785
      %v1155 = vpop.f32.mrb[0].mxu0
      %v1156 = vadd.f32 %v362, %v1155
      %v1157 = vpop.f32.mrb[0].mxu0
      %v1158 = vpop.f32.mrb[0].mxu0
      %v1159 = vadd.f32 %v362, %v1158
      %v1160 = vpop.f32.mrb[0].mxu0
      %1161 = vmatprep.mubr.bf16.mxu0 0
      %1162 = vmatmul.mubr.bf16.gmra.mrb[0].mxu0 %v788
      %v1163 = vpop.f32.mrb[0].mxu0
      %v1164 = vadd.f32 %v362, %v1163
      %v1165 = vpop.f32.mrb[0].mxu0
      %v1166 = vpop.f32.mrb[0].mxu0
      %v1167 = vadd.f32 %v362, %v1166
      %v1168 = vpop.f32.mrb[0].mxu0
      %1169 = vmatprep.mubr.bf16.mxu0 0
      %1170 = vmatmul.mubr.bf16.gmra.mrb[0].mxu0 %v791
      %v1171 = vpop.f32.mrb[0].mxu0
      %v1172 = vadd.f32 %v362, %v1171
      %v1173 = vpop.f32.mrb[0].mxu0
      %v1174 = vpop.f32.mrb[0].mxu0
      %v1175 = vadd.f32 %v362, %v1174
      %v1176 = vpop.f32.mrb[0].mxu0
      %1177 = vmatprep.mubr.bf16.mxu0 0
      %1178 = vmatmul.mubr.bf16.gmra.mrb[0].mxu0 %v794
      %v1179 = vpop.f32.mrb[0].mxu0
      %v1180 = vadd.f32 %v362, %v1179
      %v1181 = vpop.f32.mrb[0].mxu0
      %v1182 = vpop.f32.mrb[0].mxu0
      %v1183 = vadd.f32 %v362, %v1182
      %v1184 = vpop.f32.mrb[0].mxu0
      %1185 = vmatprep.mubr.bf16.mxu0 0
      %1186 = vmatmul.mubr.bf16.gmra.mrb[0].mxu0 %v797
      %v1187 = vpop.f32.mrb[0].mxu0
      %v1188 = vadd.f32 %v362, %v1187
      %v1189 = vpop.f32.mrb[0].mxu0
      %v1190 = vpop.f32.mrb[0].mxu0
      %v1191 = vadd.f32 %v362, %v1190
      %v1192 = vpop.f32.mrb[0].mxu0
      %1193 = vmatprep.mubr.bf16.mxu0 0
      %1194 = vmatmul.mubr.bf16.gmra.mrb[0].mxu0 %v800
      %v1195 = vpop.f32.mrb[0].mxu0
      %v1196 = vadd.f32 %v362, %v1195
      %v1197 = vpop.f32.mrb[0].mxu0
      %v1198 = vpop.f32.mrb[0].mxu0
      %v1199 = vadd.f32 %v362, %v1198
      %v1200 = vpop.f32.mrb[0].mxu0
      %1201 = vmatprep.mubr.bf16.mxu0 0
      %1202 = vmatmul.mubr.bf16.gmra.mrb[0].mxu0 %v803
      %v1203 = vpop.f32.mrb[0].mxu0
      %v1204 = vadd.f32 %v362, %v1203
      %v1205 = vpop.f32.mrb[0].mxu0
      %v1206 = vpop.f32.mrb[0].mxu0
      %v1207 = vadd.f32 %v362, %v1206
      %v1208 = vpop.f32.mrb[0].mxu0
      %1209 = vmatprep.mubr.bf16.mxu0 0
      %1210 = vmatmul.mubr.bf16.gmra.mrb[0].mxu0 %v806
      %v1211 = vpop.f32.mrb[0].mxu0
      %v1212 = vadd.f32 %v362, %v1211
      %v1213 = vpop.f32.mrb[0].mxu0
      %v1214 = vpop.f32.mrb[0].mxu0
      %v1215 = vadd.f32 %v362, %v1214
      %v1216 = vpop.f32.mrb[0].mxu0
      %1217 = vmatprep.mubr.bf16.mxu0 0
      %1218 = vmatmul.mubr.bf16.gmra.mrb[0].mxu0 %v809
      %v1219 = vpop.f32.mrb[0].mxu0
      %v1220 = vadd.f32 %v362, %v1219
      %v1221 = vpop.f32.mrb[0].mxu0
      %v1222 = vpop.f32.mrb[0].mxu0
      %v1223 = vadd.f32 %v362, %v1222
      %v1224 = vpop.f32.mrb[0].mxu0
      %1225 = vmatprep.mubr.bf16.mxu0 0
      %1226 = vmatmul.mubr.bf16.gmra.mrb[0].mxu0 %v812
      %v1227 = vpop.f32.mrb[0].mxu0
      %v1228 = vadd.f32 %v362, %v1227
      %v1229 = vpop.f32.mrb[0].mxu0
      %v1230 = vpop.f32.mrb[0].mxu0
      %v1231 = vadd.f32 %v362, %v1230
      %v1232 = vpop.f32.mrb[0].mxu0
      %1233 = vmatprep.mubr.bf16.mxu0 0
      %1234 = vmatmul.mubr.bf16.gmra.mrb[0].mxu0 %v815
      %v1235 = vpop.f32.mrb[0].mxu0
      %v1236 = vadd.f32 %v362, %v1235
      %v1237 = vpop.f32.mrb[0].mxu0
      %v1238 = vpop.f32.mrb[0].mxu0
      %v1239 = vadd.f32 %v362, %v1238
      %v1240 = vpop.f32.mrb[0].mxu0
      %1241 = vmatprep.mubr.bf16.mxu0 0
      %1242 = vmatmul.mubr.bf16.gmra.mrb[0].mxu0 %v818
      %v1243 = vpop.f32.mrb[0].mxu0
      %v1244 = vadd.f32 %v362, %v1243
      %v1245 = vpop.f32.mrb[0].mxu0
      %v1246 = vpop.f32.mrb[0].mxu0
      %v1247 = vadd.f32 %v362, %v1246
      %v1248 = vpop.f32.mrb[0].mxu0
      %1249 = vmatprep.mubr.bf16.mxu0 0
      %1250 = vmatmul.mubr.bf16.gmra.mrb[0].mxu0 %v821
      %v1251 = vpop.f32.mrb[0].mxu0
      %v1252 = vadd.f32 %v362, %v1251
      %v1253 = vpop.f32.mrb[0].mxu0
      %v1254 = vpop.f32.mrb[0].mxu0
      %v1255 = vadd.f32 %v362, %v1254
      %v1256 = vpop.f32.mrb[0].mxu0
      %1257 = vmatprep.mubr.bf16.mxu0 0
      %1258 = vmatmul.mubr.bf16.gmra.mrb[0].mxu0 %v824
      %v1259 = vpop.f32.mrb[0].mxu0
      %v1260 = vadd.f32 %v362, %v1259
      %v1261 = vpop.f32.mrb[0].mxu0
      %v1262 = vpop.f32.mrb[0].mxu0
      %v1263 = vadd.f32 %v362, %v1262
      %v1264 = vpop.f32.mrb[0].mxu0
      %1265 = vmatprep.mubr.bf16.mxu0 0
      %1266 = vmatmul.mubr.bf16.gmra.mrb[0].mxu0 %v827
      %v1267 = vpop.f32.mrb[0].mxu0
      %v1268 = vadd.f32 %v362, %v1267
      %v1269 = vpop.f32.mrb[0].mxu0
      %v1270 = vpop.f32.mrb[0].mxu0
      %v1271 = vadd.f32 %v362, %v1270
      %v1272 = vpop.f32.mrb[0].mxu0
      %1273 = vmatprep.mubr.bf16.mxu0 0
      %1274 = vmatmul.mubr.bf16.gmra.mrb[0].mxu0 %v830
      %v1275 = vpop.f32.mrb[0].mxu0
      %v1276 = vadd.f32 %v362, %v1275
      %v1277 = vpop.f32.mrb[0].mxu0
      %v1278 = vpop.f32.mrb[0].mxu0
      %v1279 = vadd.f32 %v362, %v1278
      %v1280 = vpop.f32.mrb[0].mxu0
      %1281 = vmatprep.mubr.bf16.mxu0 0
      %1282 = vmatmul.mubr.bf16.gmra.mrb[0].mxu0 %v833
      %v1283 = vpop.f32.mrb[0].mxu0
      %v1284 = vadd.f32 %v362, %v1283
      %v1285 = vpop.f32.mrb[0].mxu0
      %v1286 = vpop.f32.mrb[0].mxu0
      %v1287 = vadd.f32 %v362, %v1286
      %v1288 = vpop.f32.mrb[0].mxu0
      %1289 = vmatprep.mubr.bf16.mxu0 0
      %1290 = vmatmul.mubr.bf16.gmra.mrb[0].mxu0 %v836
      %v1291 = vpop.f32.mrb[0].mxu0
      %v1292 = vadd.f32 %v362, %v1291
      %v1293 = vpop.f32.mrb[0].mxu0
      %v1294 = vpop.f32.mrb[0].mxu0
      %v1295 = vadd.f32 %v362, %v1294
      %v1296 = vpop.f32.mrb[0].mxu0
      %1297 = vmatprep.mubr.bf16.mxu0 0
      %1298 = vmatmul.mubr.bf16.gmra.mrb[0].mxu0 %v839
      %v1299 = vpop.f32.mrb[0].mxu0
      %v1300 = vadd.f32 %v362, %v1299
      %v1301 = vpop.f32.mrb[0].mxu0
      %v1302 = vpop.f32.mrb[0].mxu0
      %v1303 = vadd.f32 %v362, %v1302
      %v1304 = vpop.f32.mrb[0].mxu0
      %1305 = vmatprep.mubr.bf16.mxu0 0
      %1306 = vmatmul.mubr.bf16.gmra.mrb[0].mxu0 %v842
      %v1307 = vpop.f32.mrb[0].mxu0
      %v1308 = vadd.f32 %v362, %v1307
      %v1309 = vpop.f32.mrb[0].mxu0
      %v1310 = vpop.f32.mrb[0].mxu0
      %v1311 = vadd.f32 %v362, %v1310
      %v1312 = vpop.f32.mrb[0].mxu0
      %1313 = vmatprep.mubr.bf16.mxu0 0
      %1314 = vmatmul.mubr.bf16.gmra.mrb[0].mxu0 %v845
      %v1315 = vpop.f32.mrb[0].mxu0
      %v1316 = vadd.f32 %v362, %v1315
      %v1317 = vpop.f32.mrb[0].mxu0
      %v1318 = vpop.f32.mrb[0].mxu0
      %v1319 = vadd.f32 %v362, %v1318
      %v1320 = vpop.f32.mrb[0].mxu0
      %1321 = vmatprep.mubr.bf16.mxu0 0
      %1322 = vmatmul.mubr.bf16.gmra.mrb[0].mxu0 %v848
      %v1323 = vpop.f32.mrb[0].mxu0
      %v1324 = vadd.f32 %v362, %v1323
      %v1325 = vpop.f32.mrb[0].mxu0
      %v1326 = vpop.f32.mrb[0].mxu0
      %v1327 = vadd.f32 %v362, %v1326
      %v1328 = vpop.f32.mrb[0].mxu0
      %1329 = vmatprep.mubr.bf16.mxu0 0
      %1330 = vmatmul.mubr.bf16.gmra.mrb[0].mxu0 %v851
      %v1331 = vpop.f32.mrb[0].mxu0
      %v1332 = vadd.f32 %v362, %v1331
      %v1333 = vpop.f32.mrb[0].mxu0
      %v1334 = vpop.f32.mrb[0].mxu0
      %v1335 = vadd.f32 %v362, %v1334
      %v1336 = vpop.f32.mrb[0].mxu0
      %1337 = vmatprep.mubr.bf16.mxu0 0
      %1338 = vmatmul.mubr.bf16.gmra.mrb[0].mxu0 %v854
      %v1339 = vpop.f32.mrb[0].mxu0
      %v1340 = vadd.f32 %v362, %v1339
      %v1341 = vpop.f32.mrb[0].mxu0
      %v1342 = vpop.f32.mrb[0].mxu0
      %v1343 = vadd.f32 %v362, %v1342
      %v1344 = vpop.f32.mrb[0].mxu0
      %1345 = vmatprep.mubr.bf16.mxu0 0
      %1346 = vmatmul.mubr.bf16.gmra.mrb[0].mxu0 %v857
      %v1347 = vpop.f32.mrb[0].mxu0
      %v1348 = vadd.f32 %v362, %v1347
      %v1349 = vpop.f32.mrb[0].mxu0
      %v1350 = vpop.f32.mrb[0].mxu0
      %v1351 = vadd.f32 %v362, %v1350
      %v1352 = vpop.f32.mrb[0].mxu0
      %1353 = vmatprep.mubr.bf16.mxu0 0
      %1354 = vmatmul.mubr.bf16.gmra.mrb[0].mxu0 %v860
      %v1355 = vpop.f32.mrb[0].mxu0
      %v1356 = vadd.f32 %v362, %v1355
      %v1357 = vpop.f32.mrb[0].mxu0
      %v1358 = vpop.f32.mrb[0].mxu0
      %v1359 = vadd.f32 %v362, %v1358
      %v1360 = vpop.f32.mrb[0].mxu0
      %1361 = vmatprep.mubr.bf16.mxu0 0
      %1362 = vmatmul.mubr.bf16.gmra.mrb[0].mxu0 %v863
      %v1363 = vpop.f32.mrb[0].mxu0
      %v1364 = vadd.f32 %v362, %v1363
      %v1365 = vpop.f32.mrb[0].mxu0
      %v1366 = vpop.f32.mrb[0].mxu0
      %v1367 = vadd.f32 %v362, %v1366
      %v1368 = vpop.f32.mrb[0].mxu0
      %1369 = vmatprep.mubr.bf16.mxu0 0
      %1370 = vmatmul.mubr.bf16.gmra.mrb[0].mxu0 %v866
      %v1371 = vpop.f32.mrb[0].mxu0
      %v1372 = vadd.f32 %v362, %v1371
      %v1373 = vpop.f32.mrb[0].mxu0
      %v1374 = vpop.f32.mrb[0].mxu0
      %v1375 = vadd.f32 %v362, %v1374
      %v1376 = vpop.f32.mrb[0].mxu0
      %1377 = vmatprep.mubr.bf16.mxu0 0
      %1378 = vmatmul.mubr.bf16.gmra.mrb[0].mxu0 %v869
      %v1379 = vpop.f32.mrb[0].mxu0
      %v1380 = vadd.f32 %v362, %v1379
      %v1381 = vpop.f32.mrb[0].mxu0
      %v1382 = vpop.f32.mrb[0].mxu0
      %v1383 = vadd.f32 %v362, %v1382
      %v1384 = vpop.f32.mrb[0].mxu0
      %1385 = vmatprep.mubr.bf16.mxu0 0
      %1386 = vmatmul.mubr.bf16.gmra.mrb[0].mxu0 %v872
      %v1387 = vpop.f32.mrb[0].mxu0
      %v1388 = vadd.f32 %v362, %v1387
      %v1389 = vpop.f32.mrb[0].mxu0
      %v1390 = vpop.f32.mrb[0].mxu0
      %v1391 = vadd.f32 %v362, %v1390
      %v1392 = vpop.f32.mrb[0].mxu0
      %1393 = vmatprep.mubr.bf16.mxu0 0
      %1394 = vmatmul.mubr.bf16.gmra.mrb[0].mxu0 %v875
      %v1395 = vpop.f32.mrb[0].mxu0
      %v1396 = vadd.f32 %v362, %v1395
      %v1397 = vpop.f32.mrb[0].mxu0
      %v1398 = vpop.f32.mrb[0].mxu0
      %v1399 = vadd.f32 %v362, %v1398
      %v1400 = vpop.f32.mrb[0].mxu0
      %1401 = vmatprep.mubr.bf16.mxu0 0
      %1402 = vmatmul.mubr.bf16.gmra.mrb[0].mxu0 %v878
      %v1403 = vpop.f32.mrb[0].mxu0
      %v1404 = vadd.f32 %v362, %v1403
      %v1405 = vpop.f32.mrb[0].mxu0
      %v1406 = vpop.f32.mrb[0].mxu0
      %v1407 = vadd.f32 %v362, %v1406
      %v1408 = vpop.f32.mrb[0].mxu0
      %1409 = vmatprep.mubr.bf16.mxu0 0
      %1410 = vmatmul.mubr.bf16.gmra.mrb[0].mxu0 %v881
      %v1411 = vpop.f32.mrb[0].mxu0
      %v1412 = vadd.f32 %v362, %v1411
      %v1413 = vpop.f32.mrb[0].mxu0
      %v1414 = vpop.f32.mrb[0].mxu0
      %v1415 = vadd.f32 %v362, %v1414
      %v1416 = vpop.f32.mrb[0].mxu0
      %1417 = vmatprep.mubr.bf16.mxu0 0
      %1418 = vmatmul.mubr.bf16.gmra.mrb[0].mxu0 %v884
      %v1419 = vpop.f32.mrb[0].mxu0
      %v1420 = vadd.f32 %v362, %v1419
      %v1421 = vpop.f32.mrb[0].mxu0
      %v1422 = vpop.f32.mrb[0].mxu0
      %v1423 = vadd.f32 %v362, %v1422
      %v1424 = vpop.f32.mrb[0].mxu0
      %1425 = vmatprep.mubr.bf16.mxu0 0
      %1426 = vmatmul.mubr.bf16.gmra.mrb[0].mxu0 %v887
      %v1427 = vpop.f32.mrb[0].mxu0
      %v1428 = vadd.f32 %v362, %v1427
      %v1429 = vpop.f32.mrb[0].mxu0
      %v1430 = vpop.f32.mrb[0].mxu0
      %v1431 = vadd.f32 %v362, %v1430
      %v1432 = vpop.f32.mrb[0].mxu0
      %1433 = vdwg.mxu0
      %v1434 = vpack.c.bf16 %v927, %v924
      %v1435 = vpack.c.bf16 %v935, %v932
      %v1436 = vpack.c.bf16 %v943, %v940
      %v1437 = vpack.c.bf16 %v951, %v948
      %v1438 = vpack.c.bf16 %v959, %v956
      %v1439 = vpack.c.bf16 %v967, %v964
      %v1440 = vpack.c.bf16 %v975, %v972
      %v1441 = vpack.c.bf16 %v983, %v980
      %v1442 = vpack.c.bf16 %v991, %v988
      %v1443 = vpack.c.bf16 %v999, %v996
      %v1444 = vpack.c.bf16 %v1007, %v1004
      %v1445 = vpack.c.bf16 %v1015, %v1012
      %v1446 = vpack.c.bf16 %v1023, %v1020
      %v1447 = vpack.c.bf16 %v1031, %v1028
      %v1448 = vpack.c.bf16 %v1039, %v1036
      %v1449 = vpack.c.bf16 %v1047, %v1044
      %v1450 = vpack.c.bf16 %v1055, %v1052
      %v1451 = vpack.c.bf16 %v1063, %v1060
      %v1452 = vpack.c.bf16 %v1071, %v1068
      %v1453 = vpack.c.bf16 %v1079, %v1076
      %v1454 = vpack.c.bf16 %v1087, %v1084
      %v1455 = vpack.c.bf16 %v1095, %v1092
      %v1456 = vpack.c.bf16 %v1103, %v1100
      %v1457 = vpack.c.bf16 %v1111, %v1108
      %v1458 = vpack.c.bf16 %v1119, %v1116
      %v1459 = vpack.c.bf16 %v1127, %v1124
      %v1460 = vpack.c.bf16 %v1135, %v1132
      %v1461 = vpack.c.bf16 %v1143, %v1140
      %v1462 = vpack.c.bf16 %v1151, %v1148
      %v1463 = vpack.c.bf16 %v1159, %v1156
      %v1464 = vpack.c.bf16 %v1167, %v1164
      %v1465 = vpack.c.bf16 %v1175, %v1172
      %v1466 = vpack.c.bf16 %v1183, %v1180
      %v1467 = vpack.c.bf16 %v1191, %v1188
      %v1468 = vpack.c.bf16 %v1199, %v1196
      %v1469 = vpack.c.bf16 %v1207, %v1204
      %v1470 = vpack.c.bf16 %v1215, %v1212
      %v1471 = vpack.c.bf16 %v1223, %v1220
      %v1472 = vpack.c.bf16 %v1231, %v1228
      %v1473 = vpack.c.bf16 %v1239, %v1236
      %v1474 = vpack.c.bf16 %v1247, %v1244
      %v1475 = vpack.c.bf16 %v1255, %v1252
      %v1476 = vpack.c.bf16 %v1263, %v1260
      %v1477 = vpack.c.bf16 %v1271, %v1268
      %v1478 = vpack.c.bf16 %v1279, %v1276
      %v1479 = vpack.c.bf16 %v1287, %v1284
      %v1480 = vpack.c.bf16 %v1295, %v1292
      %v1481 = vpack.c.bf16 %v1303, %v1300
      %v1482 = vpack.c.bf16 %v1311, %v1308
      %v1483 = vpack.c.bf16 %v1319, %v1316
      %v1484 = vpack.c.bf16 %v1327, %v1324
      %v1485 = vpack.c.bf16 %v1335, %v1332
      %v1486 = vpack.c.bf16 %v1343, %v1340
      %v1487 = vpack.c.bf16 %v1351, %v1348
      %v1488 = vpack.c.bf16 %v1359, %v1356
      %v1489 = vpack.c.bf16 %v1367, %v1364
      %v1490 = vpack.c.bf16 %v1375, %v1372
      %v1491 = vpack.c.bf16 %v1383, %v1380
      %v1492 = vpack.c.bf16 %v1391, %v1388
      %v1493 = vpack.c.bf16 %v1399, %v1396
      %v1494 = vpack.c.bf16 %v1407, %v1404
      %v1495 = vpack.c.bf16 %v1415, %v1412
      %v1496 = vpack.c.bf16 %v1423, %v1420
      %v1497 = vpack.c.bf16 %v1431, %v1428
      %v1498 = vxor.u32 %v1434, 2147516416
      %v1499 = vxor.u32 %v1435, 2147516416
      %v1500 = vxor.u32 %v1436, 2147516416
      %v1501 = vxor.u32 %v1437, 2147516416
      %v1502 = vxor.u32 %v1438, 2147516416
      %v1503 = vxor.u32 %v1439, 2147516416
      %v1504 = vxor.u32 %v1440, 2147516416
      %v1505 = vxor.u32 %v1441, 2147516416
      %v1506 = vxor.u32 %v1442, 2147516416
      %v1507 = vxor.u32 %v1443, 2147516416
      %v1508 = vxor.u32 %v1444, 2147516416
      %v1509 = vxor.u32 %v1445, 2147516416
      %v1510 = vxor.u32 %v1446, 2147516416
      %v1511 = vxor.u32 %v1447, 2147516416
      %v1512 = vxor.u32 %v1448, 2147516416
      %v1513 = vxor.u32 %v1449, 2147516416
      %v1514 = vxor.u32 %v1450, 2147516416
      %v1515 = vxor.u32 %v1451, 2147516416
      %v1516 = vxor.u32 %v1452, 2147516416
      %v1517 = vxor.u32 %v1453, 2147516416
      %v1518 = vxor.u32 %v1454, 2147516416
      %v1519 = vxor.u32 %v1455, 2147516416
      %v1520 = vxor.u32 %v1456, 2147516416
      %v1521 = vxor.u32 %v1457, 2147516416
      %v1522 = vxor.u32 %v1458, 2147516416
      %v1523 = vxor.u32 %v1459, 2147516416
      %v1524 = vxor.u32 %v1460, 2147516416
      %v1525 = vxor.u32 %v1461, 2147516416
      %v1526 = vxor.u32 %v1462, 2147516416
      %v1527 = vxor.u32 %v1463, 2147516416
      %v1528 = vxor.u32 %v1464, 2147516416
      %v1529 = vxor.u32 %v1465, 2147516416
      %v1530 = vxor.u32 %v1466, 2147516416
      %v1531 = vxor.u32 %v1467, 2147516416
      %v1532 = vxor.u32 %v1468, 2147516416
      %v1533 = vxor.u32 %v1469, 2147516416
      %v1534 = vxor.u32 %v1470, 2147516416
      %v1535 = vxor.u32 %v1471, 2147516416
      %v1536 = vxor.u32 %v1472, 2147516416
      %v1537 = vxor.u32 %v1473, 2147516416
      %v1538 = vxor.u32 %v1474, 2147516416
      %v1539 = vxor.u32 %v1475, 2147516416
      %v1540 = vxor.u32 %v1476, 2147516416
      %v1541 = vxor.u32 %v1477, 2147516416
      %v1542 = vxor.u32 %v1478, 2147516416
      %v1543 = vxor.u32 %v1479, 2147516416
      %v1544 = vxor.u32 %v1480, 2147516416
      %v1545 = vxor.u32 %v1481, 2147516416
      %v1546 = vxor.u32 %v1482, 2147516416
      %v1547 = vxor.u32 %v1483, 2147516416
      %v1548 = vxor.u32 %v1484, 2147516416
      %v1549 = vxor.u32 %v1485, 2147516416
      %v1550 = vxor.u32 %v1486, 2147516416
      %v1551 = vxor.u32 %v1487, 2147516416
      %v1552 = vxor.u32 %v1488, 2147516416
      %v1553 = vxor.u32 %v1489, 2147516416
      %v1554 = vxor.u32 %v1490, 2147516416
      %v1555 = vxor.u32 %v1491, 2147516416
      %v1556 = vxor.u32 %v1492, 2147516416
      %v1557 = vxor.u32 %v1493, 2147516416
      %v1558 = vxor.u32 %v1494, 2147516416
      %v1559 = vxor.u32 %v1495, 2147516416
      %v1560 = vxor.u32 %v1496, 2147516416
      %v1561 = vxor.u32 %v1497, 2147516416
      %v1563 = vmul.bf16 %v1498, 1069105081
      %v1564 = vpow.bf16.pop %v1563
      %v1566 = vmul.bf16 %v1499, 1069105081
      %v1567 = vpow.bf16.pop %v1566
      %v1569 = vmul.bf16 %v1500, 1069105081
      %v1570 = vpow.bf16.pop %v1569
      %v1572 = vmul.bf16 %v1501, 1069105081
      %v1573 = vpow.bf16.pop %v1572
      %v1575 = vmul.bf16 %v1502, 1069105081
      %v1576 = vpow.bf16.pop %v1575
      %v1578 = vmul.bf16 %v1503, 1069105081
      %v1579 = vpow.bf16.pop %v1578
      %v1581 = vmul.bf16 %v1504, 1069105081
      %v1582 = vpow.bf16.pop %v1581
      %v1584 = vmul.bf16 %v1505, 1069105081
      %v1585 = vpow.bf16.pop %v1584
      %v1587 = vmul.bf16 %v1506, 1069105081
      %v1588 = vpow.bf16.pop %v1587
      %v1590 = vmul.bf16 %v1507, 1069105081
      %v1591 = vpow.bf16.pop %v1590
      %v1593 = vmul.bf16 %v1508, 1069105081
      %v1594 = vpow.bf16.pop %v1593
      %v1596 = vmul.bf16 %v1509, 1069105081
      %v1597 = vpow.bf16.pop %v1596
      %v1599 = vmul.bf16 %v1510, 1069105081
      %v1600 = vpow.bf16.pop %v1599
      %v1602 = vmul.bf16 %v1511, 1069105081
      %v1603 = vpow.bf16.pop %v1602
      %v1605 = vmul.bf16 %v1512, 1069105081
      %v1606 = vpow.bf16.pop %v1605
      %v1608 = vmul.bf16 %v1513, 1069105081
      %v1609 = vpow.bf16.pop %v1608
      %v1611 = vmul.bf16 %v1514, 1069105081
      %v1612 = vpow.bf16.pop %v1611
      %v1614 = vmul.bf16 %v1515, 1069105081
      %v1615 = vpow.bf16.pop %v1614
      %v1617 = vmul.bf16 %v1516, 1069105081
      %v1618 = vpow.bf16.pop %v1617
      %v1620 = vmul.bf16 %v1517, 1069105081
      %v1621 = vpow.bf16.pop %v1620
      %v1623 = vmul.bf16 %v1518, 1069105081
      %v1624 = vpow.bf16.pop %v1623
      %v1626 = vmul.bf16 %v1519, 1069105081
      %v1627 = vpow.bf16.pop %v1626
      %v1629 = vmul.bf16 %v1520, 1069105081
      %v1630 = vpow.bf16.pop %v1629
      %v1632 = vmul.bf16 %v1521, 1069105081
      %v1633 = vpow.bf16.pop %v1632
      %v1635 = vmul.bf16 %v1522, 1069105081
      %v1636 = vpow.bf16.pop %v1635
      %v1638 = vmul.bf16 %v1523, 1069105081
      %v1639 = vpow.bf16.pop %v1638
      %v1641 = vmul.bf16 %v1524, 1069105081
      %v1642 = vpow.bf16.pop %v1641
      %v1644 = vmul.bf16 %v1525, 1069105081
      %v1645 = vpow.bf16.pop %v1644
      %v1647 = vmul.bf16 %v1526, 1069105081
      %v1648 = vpow.bf16.pop %v1647
      %v1650 = vmul.bf16 %v1527, 1069105081
      %v1651 = vpow.bf16.pop %v1650
      %v1653 = vmul.bf16 %v1528, 1069105081
      %v1654 = vpow.bf16.pop %v1653
      %v1656 = vmul.bf16 %v1529, 1069105081
      %v1657 = vpow.bf16.pop %v1656
      %v1659 = vmul.bf16 %v1530, 1069105081
      %v1660 = vpow.bf16.pop %v1659
      %v1662 = vmul.bf16 %v1531, 1069105081
      %v1663 = vpow.bf16.pop %v1662
      %v1665 = vmul.bf16 %v1532, 1069105081
      %v1666 = vpow.bf16.pop %v1665
      %v1668 = vmul.bf16 %v1533, 1069105081
      %v1669 = vpow.bf16.pop %v1668
      %v1671 = vmul.bf16 %v1534, 1069105081
      %v1672 = vpow.bf16.pop %v1671
      %v1674 = vmul.bf16 %v1535, 1069105081
      %v1675 = vpow.bf16.pop %v1674
      %v1677 = vmul.bf16 %v1536, 1069105081
      %v1678 = vpow.bf16.pop %v1677
      %v1680 = vmul.bf16 %v1537, 1069105081
      %v1681 = vpow.bf16.pop %v1680
      %v1683 = vmul.bf16 %v1538, 1069105081
      %v1684 = vpow.bf16.pop %v1683
      %v1686 = vmul.bf16 %v1539, 1069105081
      %v1687 = vpow.bf16.pop %v1686
      %v1689 = vmul.bf16 %v1540, 1069105081
      %v1690 = vpow.bf16.pop %v1689
      %v1692 = vmul.bf16 %v1541, 1069105081
      %v1693 = vpow.bf16.pop %v1692
      %v1695 = vmul.bf16 %v1542, 1069105081
      %v1696 = vpow.bf16.pop %v1695
      %v1698 = vmul.bf16 %v1543, 1069105081
      %v1699 = vpow.bf16.pop %v1698
      %v1701 = vmul.bf16 %v1544, 1069105081
      %v1702 = vpow.bf16.pop %v1701
      %v1704 = vmul.bf16 %v1545, 1069105081
      %v1705 = vpow.bf16.pop %v1704
      %v1707 = vmul.bf16 %v1546, 1069105081
      %v1708 = vpow.bf16.pop %v1707
      %v1710 = vmul.bf16 %v1547, 1069105081
      %v1711 = vpow.bf16.pop %v1710
      %v1713 = vmul.bf16 %v1548, 1069105081
      %v1714 = vpow.bf16.pop %v1713
      %v1716 = vmul.bf16 %v1549, 1069105081
      %v1717 = vpow.bf16.pop %v1716
      %v1719 = vmul.bf16 %v1550, 1069105081
      %v1720 = vpow.bf16.pop %v1719
      %v1722 = vmul.bf16 %v1551, 1069105081
      %v1723 = vpow.bf16.pop %v1722
      %v1725 = vmul.bf16 %v1552, 1069105081
      %v1726 = vpow.bf16.pop %v1725
      %v1728 = vmul.bf16 %v1553, 1069105081
      %v1729 = vpow.bf16.pop %v1728
      %v1731 = vmul.bf16 %v1554, 1069105081
      %v1732 = vpow.bf16.pop %v1731
      %v1734 = vmul.bf16 %v1555, 1069105081
      %v1735 = vpow.bf16.pop %v1734
      %v1737 = vmul.bf16 %v1556, 1069105081
      %v1738 = vpow.bf16.pop %v1737
      %v1740 = vmul.bf16 %v1557, 1069105081
      %v1741 = vpow.bf16.pop %v1740
      %v1743 = vmul.bf16 %v1558, 1069105081
      %v1744 = vpow.bf16.pop %v1743
      %v1746 = vmul.bf16 %v1559, 1069105081
      %v1747 = vpow.bf16.pop %v1746
      %v1749 = vmul.bf16 %v1560, 1069105081
      %v1750 = vpow.bf16.pop %v1749
      %v1752 = vmul.bf16 %v1561, 1069105081
      %v1753 = vpow.bf16.pop %v1752
      %v1754 = vadd.bf16 %v1564, 1065369472
      %v1755 = vadd.bf16 %v1567, 1065369472
      %v1756 = vadd.bf16 %v1570, 1065369472
      %v1757 = vadd.bf16 %v1573, 1065369472
      %v1758 = vadd.bf16 %v1576, 1065369472
      %v1759 = vadd.bf16 %v1579, 1065369472
      %v1760 = vadd.bf16 %v1582, 1065369472
      %v1761 = vadd.bf16 %v1585, 1065369472
      %v1762 = vadd.bf16 %v1588, 1065369472
      %v1763 = vadd.bf16 %v1591, 1065369472
      %v1764 = vadd.bf16 %v1594, 1065369472
      %v1765 = vadd.bf16 %v1597, 1065369472
      %v1766 = vadd.bf16 %v1600, 1065369472
      %v1767 = vadd.bf16 %v1603, 1065369472
      %v1768 = vadd.bf16 %v1606, 1065369472
      %v1769 = vadd.bf16 %v1609, 1065369472
      %v1770 = vadd.bf16 %v1612, 1065369472
      %v1771 = vadd.bf16 %v1615, 1065369472
      %v1772 = vadd.bf16 %v1618, 1065369472
      %v1773 = vadd.bf16 %v1621, 1065369472
      %v1774 = vadd.bf16 %v1624, 1065369472
      %v1775 = vadd.bf16 %v1627, 1065369472
      %v1776 = vadd.bf16 %v1630, 1065369472
      %v1777 = vadd.bf16 %v1633, 1065369472
      %v1778 = vadd.bf16 %v1636, 1065369472
      %v1779 = vadd.bf16 %v1639, 1065369472
      %v1780 = vadd.bf16 %v1642, 1065369472
      %v1781 = vadd.bf16 %v1645, 1065369472
      %v1782 = vadd.bf16 %v1648, 1065369472
      %v1783 = vadd.bf16 %v1651, 1065369472
      %v1784 = vadd.bf16 %v1654, 1065369472
      %v1785 = vadd.bf16 %v1657, 1065369472
      %v1786 = vadd.bf16 %v1660, 1065369472
      %v1787 = vadd.bf16 %v1663, 1065369472
      %v1788 = vadd.bf16 %v1666, 1065369472
      %v1789 = vadd.bf16 %v1669, 1065369472
      %v1790 = vadd.bf16 %v1672, 1065369472
      %v1791 = vadd.bf16 %v1675, 1065369472
      %v1792 = vadd.bf16 %v1678, 1065369472
      %v1793 = vadd.bf16 %v1681, 1065369472
      %v1794 = vadd.bf16 %v1684, 1065369472
      %v1795 = vadd.bf16 %v1687, 1065369472
      %v1796 = vadd.bf16 %v1690, 1065369472
      %v1797 = vadd.bf16 %v1693, 1065369472
      %v1798 = vadd.bf16 %v1696, 1065369472
      %v1799 = vadd.bf16 %v1699, 1065369472
      %v1800 = vadd.bf16 %v1702, 1065369472
      %v1801 = vadd.bf16 %v1705, 1065369472
      %v1802 = vadd.bf16 %v1708, 1065369472
      %v1803 = vadd.bf16 %v1711, 1065369472
      %v1804 = vadd.bf16 %v1714, 1065369472
      %v1805 = vadd.bf16 %v1717, 1065369472
      %v1806 = vadd.bf16 %v1720, 1065369472
      %v1807 = vadd.bf16 %v1723, 1065369472
      %v1808 = vadd.bf16 %v1726, 1065369472
      %v1809 = vadd.bf16 %v1729, 1065369472
      %v1810 = vadd.bf16 %v1732, 1065369472
      %v1811 = vadd.bf16 %v1735, 1065369472
      %v1812 = vadd.bf16 %v1738, 1065369472
      %v1813 = vadd.bf16 %v1741, 1065369472
      %v1814 = vadd.bf16 %v1744, 1065369472
      %v1815 = vadd.bf16 %v1747, 1065369472
      %v1816 = vadd.bf16 %v1750, 1065369472
      %v1817 = vadd.bf16 %v1753, 1065369472
      %v1818 = vrcp.bf16.pop %v1754
      %v1819 = vmul.bf16 1065369472, %v1818
      %v1820 = vrcp.bf16.pop %v1755
      %v1821 = vmul.bf16 1065369472, %v1820
      %v1822 = vrcp.bf16.pop %v1756
      %v1823 = vmul.bf16 1065369472, %v1822
      %v1824 = vrcp.bf16.pop %v1757
      %v1825 = vmul.bf16 1065369472, %v1824
      %v1826 = vrcp.bf16.pop %v1758
      %v1827 = vmul.bf16 1065369472, %v1826
      %v1828 = vrcp.bf16.pop %v1759
      %v1829 = vmul.bf16 1065369472, %v1828
      %v1830 = vrcp.bf16.pop %v1760
      %v1831 = vmul.bf16 1065369472, %v1830
      %v1832 = vrcp.bf16.pop %v1761
      %v1833 = vmul.bf16 1065369472, %v1832
      %v1834 = vrcp.bf16.pop %v1762
      %v1835 = vmul.bf16 1065369472, %v1834
      %v1836 = vrcp.bf16.pop %v1763
      %v1837 = vmul.bf16 1065369472, %v1836
      %v1838 = vrcp.bf16.pop %v1764
      %v1839 = vmul.bf16 1065369472, %v1838
      %v1840 = vrcp.bf16.pop %v1765
      %v1841 = vmul.bf16 1065369472, %v1840
      %v1842 = vrcp.bf16.pop %v1766
      %v1843 = vmul.bf16 1065369472, %v1842
      %v1844 = vrcp.bf16.pop %v1767
      %v1845 = vmul.bf16 1065369472, %v1844
      %v1846 = vrcp.bf16.pop %v1768
      %v1847 = vmul.bf16 1065369472, %v1846
      %v1848 = vrcp.bf16.pop %v1769
      %v1849 = vmul.bf16 1065369472, %v1848
      %v1850 = vrcp.bf16.pop %v1770
      %v1851 = vmul.bf16 1065369472, %v1850
      %v1852 = vrcp.bf16.pop %v1771
      %v1853 = vmul.bf16 1065369472, %v1852
      %v1854 = vrcp.bf16.pop %v1772
      %v1855 = vmul.bf16 1065369472, %v1854
      %v1856 = vrcp.bf16.pop %v1773
      %v1857 = vmul.bf16 1065369472, %v1856
      %v1858 = vrcp.bf16.pop %v1774
      %v1859 = vmul.bf16 1065369472, %v1858
      %v1860 = vrcp.bf16.pop %v1775
      %v1861 = vmul.bf16 1065369472, %v1860
      %v1862 = vrcp.bf16.pop %v1776
      %v1863 = vmul.bf16 1065369472, %v1862
      %v1864 = vrcp.bf16.pop %v1777
      %v1865 = vmul.bf16 1065369472, %v1864
      %v1866 = vrcp.bf16.pop %v1778
      %v1867 = vmul.bf16 1065369472, %v1866
      %v1868 = vrcp.bf16.pop %v1779
      %v1869 = vmul.bf16 1065369472, %v1868
      %v1870 = vrcp.bf16.pop %v1780
      %v1871 = vmul.bf16 1065369472, %v1870
      %v1872 = vrcp.bf16.pop %v1781
      %v1873 = vmul.bf16 1065369472, %v1872
      %v1874 = vrcp.bf16.pop %v1782
      %v1875 = vmul.bf16 1065369472, %v1874
      %v1876 = vrcp.bf16.pop %v1783
      %v1877 = vmul.bf16 1065369472, %v1876
      %v1878 = vrcp.bf16.pop %v1784
      %v1879 = vmul.bf16 1065369472, %v1878
      %v1880 = vrcp.bf16.pop %v1785
      %v1881 = vmul.bf16 1065369472, %v1880
      %v1882 = vrcp.bf16.pop %v1786
      %v1883 = vmul.bf16 1065369472, %v1882
      %v1884 = vrcp.bf16.pop %v1787
      %v1885 = vmul.bf16 1065369472, %v1884
      %v1886 = vrcp.bf16.pop %v1788
      %v1887 = vmul.bf16 1065369472, %v1886
      %v1888 = vrcp.bf16.pop %v1789
      %v1889 = vmul.bf16 1065369472, %v1888
      %v1890 = vrcp.bf16.pop %v1790
      %v1891 = vmul.bf16 1065369472, %v1890
      %v1892 = vrcp.bf16.pop %v1791
      %v1893 = vmul.bf16 1065369472, %v1892
      %v1894 = vrcp.bf16.pop %v1792
      %v1895 = vmul.bf16 1065369472, %v1894
      %v1896 = vrcp.bf16.pop %v1793
      %v1897 = vmul.bf16 1065369472, %v1896
      %v1898 = vrcp.bf16.pop %v1794
      %v1899 = vmul.bf16 1065369472, %v1898
      %v1900 = vrcp.bf16.pop %v1795
      %v1901 = vmul.bf16 1065369472, %v1900
      %v1902 = vrcp.bf16.pop %v1796
      %v1903 = vmul.bf16 1065369472, %v1902
      %v1904 = vrcp.bf16.pop %v1797
      %v1905 = vmul.bf16 1065369472, %v1904
      %v1906 = vrcp.bf16.pop %v1798
      %v1907 = vmul.bf16 1065369472, %v1906
      %v1908 = vrcp.bf16.pop %v1799
      %v1909 = vmul.bf16 1065369472, %v1908
      %v1910 = vrcp.bf16.pop %v1800
      %v1911 = vmul.bf16 1065369472, %v1910
      %v1912 = vrcp.bf16.pop %v1801
      %v1913 = vmul.bf16 1065369472, %v1912
      %v1914 = vrcp.bf16.pop %v1802
      %v1915 = vmul.bf16 1065369472, %v1914
      %v1916 = vrcp.bf16.pop %v1803
      %v1917 = vmul.bf16 1065369472, %v1916
      %v1918 = vrcp.bf16.pop %v1804
      %v1919 = vmul.bf16 1065369472, %v1918
      %v1920 = vrcp.bf16.pop %v1805
      %v1921 = vmul.bf16 1065369472, %v1920
      %v1922 = vrcp.bf16.pop %v1806
      %v1923 = vmul.bf16 1065369472, %v1922
      %v1924 = vrcp.bf16.pop %v1807
      %v1925 = vmul.bf16 1065369472, %v1924
      %v1926 = vrcp.bf16.pop %v1808
      %v1927 = vmul.bf16 1065369472, %v1926
      %v1928 = vrcp.bf16.pop %v1809
      %v1929 = vmul.bf16 1065369472, %v1928
      %v1930 = vrcp.bf16.pop %v1810
      %v1931 = vmul.bf16 1065369472, %v1930
      %v1932 = vrcp.bf16.pop %v1811
      %v1933 = vmul.bf16 1065369472, %v1932
      %v1934 = vrcp.bf16.pop %v1812
      %v1935 = vmul.bf16 1065369472, %v1934
      %v1936 = vrcp.bf16.pop %v1813
      %v1937 = vmul.bf16 1065369472, %v1936
      %v1938 = vrcp.bf16.pop %v1814
      %v1939 = vmul.bf16 1065369472, %v1938
      %v1940 = vrcp.bf16.pop %v1815
      %v1941 = vmul.bf16 1065369472, %v1940
      %v1942 = vrcp.bf16.pop %v1816
      %v1943 = vmul.bf16 1065369472, %v1942
      %v1944 = vrcp.bf16.pop %v1817
      %v1945 = vmul.bf16 1065369472, %v1944
      %v1946 = vunpack.c.l.bf16 %v1819
      %v1947 = vunpack.c.h.bf16 %v1819
      %v1948 = vunpack.c.l.bf16 %v1821
      %v1949 = vunpack.c.h.bf16 %v1821
      %v1950 = vunpack.c.l.bf16 %v1823
      %v1951 = vunpack.c.h.bf16 %v1823
      %v1952 = vunpack.c.l.bf16 %v1825
      %v1953 = vunpack.c.h.bf16 %v1825
      %v1954 = vunpack.c.l.bf16 %v1827
      %v1955 = vunpack.c.h.bf16 %v1827
      %v1956 = vunpack.c.l.bf16 %v1829
      %v1957 = vunpack.c.h.bf16 %v1829
      %v1958 = vunpack.c.l.bf16 %v1831
      %v1959 = vunpack.c.h.bf16 %v1831
      %v1960 = vunpack.c.l.bf16 %v1833
      %v1961 = vunpack.c.h.bf16 %v1833
      %v1962 = vunpack.c.l.bf16 %v1835
      %v1963 = vunpack.c.h.bf16 %v1835
      %v1964 = vunpack.c.l.bf16 %v1837
      %v1965 = vunpack.c.h.bf16 %v1837
      %v1966 = vunpack.c.l.bf16 %v1839
      %v1967 = vunpack.c.h.bf16 %v1839
      %v1968 = vunpack.c.l.bf16 %v1841
      %v1969 = vunpack.c.h.bf16 %v1841
      %v1970 = vunpack.c.l.bf16 %v1843
      %v1971 = vunpack.c.h.bf16 %v1843
      %v1972 = vunpack.c.l.bf16 %v1845
      %v1973 = vunpack.c.h.bf16 %v1845
      %v1974 = vunpack.c.l.bf16 %v1847
      %v1975 = vunpack.c.h.bf16 %v1847
      %v1976 = vunpack.c.l.bf16 %v1849
      %v1977 = vunpack.c.h.bf16 %v1849
      %v1978 = vunpack.c.l.bf16 %v1851
      %v1979 = vunpack.c.h.bf16 %v1851
      %v1980 = vunpack.c.l.bf16 %v1853
      %v1981 = vunpack.c.h.bf16 %v1853
      %v1982 = vunpack.c.l.bf16 %v1855
      %v1983 = vunpack.c.h.bf16 %v1855
      %v1984 = vunpack.c.l.bf16 %v1857
      %v1985 = vunpack.c.h.bf16 %v1857
      %v1986 = vunpack.c.l.bf16 %v1859
      %v1987 = vunpack.c.h.bf16 %v1859
      %v1988 = vunpack.c.l.bf16 %v1861
      %v1989 = vunpack.c.h.bf16 %v1861
      %v1990 = vunpack.c.l.bf16 %v1863
      %v1991 = vunpack.c.h.bf16 %v1863
      %v1992 = vunpack.c.l.bf16 %v1865
      %v1993 = vunpack.c.h.bf16 %v1865
      %v1994 = vunpack.c.l.bf16 %v1867
      %v1995 = vunpack.c.h.bf16 %v1867
      %v1996 = vunpack.c.l.bf16 %v1869
      %v1997 = vunpack.c.h.bf16 %v1869
      %v1998 = vunpack.c.l.bf16 %v1871
      %v1999 = vunpack.c.h.bf16 %v1871
      %v2000 = vunpack.c.l.bf16 %v1873
      %v2001 = vunpack.c.h.bf16 %v1873
      %v2002 = vunpack.c.l.bf16 %v1875
      %v2003 = vunpack.c.h.bf16 %v1875
      %v2004 = vunpack.c.l.bf16 %v1877
      %v2005 = vunpack.c.h.bf16 %v1877
      %v2006 = vunpack.c.l.bf16 %v1879
      %v2007 = vunpack.c.h.bf16 %v1879
      %v2008 = vunpack.c.l.bf16 %v1881
      %v2009 = vunpack.c.h.bf16 %v1881
      %v2010 = vunpack.c.l.bf16 %v1883
      %v2011 = vunpack.c.h.bf16 %v1883
      %v2012 = vunpack.c.l.bf16 %v1885
      %v2013 = vunpack.c.h.bf16 %v1885
      %v2014 = vunpack.c.l.bf16 %v1887
      %v2015 = vunpack.c.h.bf16 %v1887
      %v2016 = vunpack.c.l.bf16 %v1889
      %v2017 = vunpack.c.h.bf16 %v1889
      %v2018 = vunpack.c.l.bf16 %v1891
      %v2019 = vunpack.c.h.bf16 %v1891
      %v2020 = vunpack.c.l.bf16 %v1893
      %v2021 = vunpack.c.h.bf16 %v1893
      %v2022 = vunpack.c.l.bf16 %v1895
      %v2023 = vunpack.c.h.bf16 %v1895
      %v2024 = vunpack.c.l.bf16 %v1897
      %v2025 = vunpack.c.h.bf16 %v1897
      %v2026 = vunpack.c.l.bf16 %v1899
      %v2027 = vunpack.c.h.bf16 %v1899
      %v2028 = vunpack.c.l.bf16 %v1901
      %v2029 = vunpack.c.h.bf16 %v1901
      %v2030 = vunpack.c.l.bf16 %v1903
      %v2031 = vunpack.c.h.bf16 %v1903
      %v2032 = vunpack.c.l.bf16 %v1905
      %v2033 = vunpack.c.h.bf16 %v1905
      %v2034 = vunpack.c.l.bf16 %v1907
      %v2035 = vunpack.c.h.bf16 %v1907
      %v2036 = vunpack.c.l.bf16 %v1909
      %v2037 = vunpack.c.h.bf16 %v1909
      %v2038 = vunpack.c.l.bf16 %v1911
      %v2039 = vunpack.c.h.bf16 %v1911
      %v2040 = vunpack.c.l.bf16 %v1913
      %v2041 = vunpack.c.h.bf16 %v1913
      %v2042 = vunpack.c.l.bf16 %v1915
      %v2043 = vunpack.c.h.bf16 %v1915
      %v2044 = vunpack.c.l.bf16 %v1917
      %v2045 = vunpack.c.h.bf16 %v1917
      %v2046 = vunpack.c.l.bf16 %v1919
      %v2047 = vunpack.c.h.bf16 %v1919
      %v2048 = vunpack.c.l.bf16 %v1921
      %v2049 = vunpack.c.h.bf16 %v1921
      %v2050 = vunpack.c.l.bf16 %v1923
      %v2051 = vunpack.c.h.bf16 %v1923
      %v2052 = vunpack.c.l.bf16 %v1925
      %v2053 = vunpack.c.h.bf16 %v1925
      %v2054 = vunpack.c.l.bf16 %v1927
      %v2055 = vunpack.c.h.bf16 %v1927
      %v2056 = vunpack.c.l.bf16 %v1929
      %v2057 = vunpack.c.h.bf16 %v1929
      %v2058 = vunpack.c.l.bf16 %v1931
      %v2059 = vunpack.c.h.bf16 %v1931
      %v2060 = vunpack.c.l.bf16 %v1933
      %v2061 = vunpack.c.h.bf16 %v1933
      %v2062 = vunpack.c.l.bf16 %v1935
      %v2063 = vunpack.c.h.bf16 %v1935
      %v2064 = vunpack.c.l.bf16 %v1937
      %v2065 = vunpack.c.h.bf16 %v1937
      %v2066 = vunpack.c.l.bf16 %v1939
      %v2067 = vunpack.c.h.bf16 %v1939
      %v2068 = vunpack.c.l.bf16 %v1941
      %v2069 = vunpack.c.h.bf16 %v1941
      %v2070 = vunpack.c.l.bf16 %v1943
      %v2071 = vunpack.c.h.bf16 %v1943
      %v2072 = vunpack.c.l.bf16 %v1945
      %v2073 = vunpack.c.h.bf16 %v1945
      %v2074 = vmul.f32 %v924, %v1946
      %v2075 = vmul.f32 %v927, %v1947
      %v2076 = vmul.f32 %v932, %v1948
      %v2077 = vmul.f32 %v935, %v1949
      %v2078 = vmul.f32 %v940, %v1950
      %v2079 = vmul.f32 %v943, %v1951
      %v2080 = vmul.f32 %v948, %v1952
      %v2081 = vmul.f32 %v951, %v1953
      %v2082 = vmul.f32 %v956, %v1954
      %v2083 = vmul.f32 %v959, %v1955
      %v2084 = vmul.f32 %v964, %v1956
      %v2085 = vmul.f32 %v967, %v1957
      %v2086 = vmul.f32 %v972, %v1958
      %v2087 = vmul.f32 %v975, %v1959
      %v2088 = vmul.f32 %v980, %v1960
      %v2089 = vmul.f32 %v983, %v1961
      %v2090 = vmul.f32 %v988, %v1962
      %v2091 = vmul.f32 %v991, %v1963
      %v2092 = vmul.f32 %v996, %v1964
      %v2093 = vmul.f32 %v999, %v1965
      %v2094 = vmul.f32 %v1004, %v1966
      %v2095 = vmul.f32 %v1007, %v1967
      %v2096 = vmul.f32 %v1012, %v1968
      %v2097 = vmul.f32 %v1015, %v1969
      %v2098 = vmul.f32 %v1020, %v1970
      %v2099 = vmul.f32 %v1023, %v1971
      %v2100 = vmul.f32 %v1028, %v1972
      %v2101 = vmul.f32 %v1031, %v1973
      %v2102 = vmul.f32 %v1036, %v1974
      %v2103 = vmul.f32 %v1039, %v1975
      %v2104 = vmul.f32 %v1044, %v1976
      %v2105 = vmul.f32 %v1047, %v1977
      %v2106 = vmul.f32 %v1052, %v1978
      %v2107 = vmul.f32 %v1055, %v1979
      %v2108 = vmul.f32 %v1060, %v1980
      %v2109 = vmul.f32 %v1063, %v1981
      %v2110 = vmul.f32 %v1068, %v1982
      %v2111 = vmul.f32 %v1071, %v1983
      %v2112 = vmul.f32 %v1076, %v1984
      %v2113 = vmul.f32 %v1079, %v1985
      %v2114 = vmul.f32 %v1084, %v1986
      %v2115 = vmul.f32 %v1087, %v1987
      %v2116 = vmul.f32 %v1092, %v1988
      %v2117 = vmul.f32 %v1095, %v1989
      %v2118 = vmul.f32 %v1100, %v1990
      %v2119 = vmul.f32 %v1103, %v1991
      %v2120 = vmul.f32 %v1108, %v1992
      %v2121 = vmul.f32 %v1111, %v1993
      %v2122 = vmul.f32 %v1116, %v1994
      %v2123 = vmul.f32 %v1119, %v1995
      %v2124 = vmul.f32 %v1124, %v1996
      %v2125 = vmul.f32 %v1127, %v1997
      %v2126 = vmul.f32 %v1132, %v1998
      %v2127 = vmul.f32 %v1135, %v1999
      %v2128 = vmul.f32 %v1140, %v2000
      %v2129 = vmul.f32 %v1143, %v2001
      %v2130 = vmul.f32 %v1148, %v2002
      %v2131 = vmul.f32 %v1151, %v2003
      %v2132 = vmul.f32 %v1156, %v2004
      %v2133 = vmul.f32 %v1159, %v2005
      %v2134 = vmul.f32 %v1164, %v2006
      %v2135 = vmul.f32 %v1167, %v2007
      %v2136 = vmul.f32 %v1172, %v2008
      %v2137 = vmul.f32 %v1175, %v2009
      %v2138 = vmul.f32 %v1180, %v2010
      %v2139 = vmul.f32 %v1183, %v2011
      %v2140 = vmul.f32 %v1188, %v2012
      %v2141 = vmul.f32 %v1191, %v2013
      %v2142 = vmul.f32 %v1196, %v2014
      %v2143 = vmul.f32 %v1199, %v2015
      %v2144 = vmul.f32 %v1204, %v2016
      %v2145 = vmul.f32 %v1207, %v2017
      %v2146 = vmul.f32 %v1212, %v2018
      %v2147 = vmul.f32 %v1215, %v2019
      %v2148 = vmul.f32 %v1220, %v2020
      %v2149 = vmul.f32 %v1223, %v2021
      %v2150 = vmul.f32 %v1228, %v2022
      %v2151 = vmul.f32 %v1231, %v2023
      %v2152 = vmul.f32 %v1236, %v2024
      %v2153 = vmul.f32 %v1239, %v2025
      %v2154 = vmul.f32 %v1244, %v2026
      %v2155 = vmul.f32 %v1247, %v2027
      %v2156 = vmul.f32 %v1252, %v2028
      %v2157 = vmul.f32 %v1255, %v2029
      %v2158 = vmul.f32 %v1260, %v2030
      %v2159 = vmul.f32 %v1263, %v2031
      %v2160 = vmul.f32 %v1268, %v2032
      %v2161 = vmul.f32 %v1271, %v2033
      %v2162 = vmul.f32 %v1276, %v2034
      %v2163 = vmul.f32 %v1279, %v2035
      %v2164 = vmul.f32 %v1284, %v2036
      %v2165 = vmul.f32 %v1287, %v2037
      %v2166 = vmul.f32 %v1292, %v2038
      %v2167 = vmul.f32 %v1295, %v2039
      %v2168 = vmul.f32 %v1300, %v2040
      %v2169 = vmul.f32 %v1303, %v2041
      %v2170 = vmul.f32 %v1308, %v2042
      %v2171 = vmul.f32 %v1311, %v2043
      %v2172 = vmul.f32 %v1316, %v2044
      %v2173 = vmul.f32 %v1319, %v2045
      %v2174 = vmul.f32 %v1324, %v2046
      %v2175 = vmul.f32 %v1327, %v2047
      %v2176 = vmul.f32 %v1332, %v2048
      %v2177 = vmul.f32 %v1335, %v2049
      %v2178 = vmul.f32 %v1340, %v2050
      %v2179 = vmul.f32 %v1343, %v2051
      %v2180 = vmul.f32 %v1348, %v2052
      %v2181 = vmul.f32 %v1351, %v2053
      %v2182 = vmul.f32 %v1356, %v2054
      %v2183 = vmul.f32 %v1359, %v2055
      %v2184 = vmul.f32 %v1364, %v2056
      %v2185 = vmul.f32 %v1367, %v2057
      %v2186 = vmul.f32 %v1372, %v2058
      %v2187 = vmul.f32 %v1375, %v2059
      %v2188 = vmul.f32 %v1380, %v2060
      %v2189 = vmul.f32 %v1383, %v2061
      %v2190 = vmul.f32 %v1388, %v2062
      %v2191 = vmul.f32 %v1391, %v2063
      %v2192 = vmul.f32 %v1396, %v2064
      %v2193 = vmul.f32 %v1399, %v2065
      %v2194 = vmul.f32 %v1404, %v2066
      %v2195 = vmul.f32 %v1407, %v2067
      %v2196 = vmul.f32 %v1412, %v2068
      %v2197 = vmul.f32 %v1415, %v2069
      %v2198 = vmul.f32 %v1420, %v2070
      %v2199 = vmul.f32 %v1423, %v2071
      %v2200 = vmul.f32 %v1428, %v2072
      %v2201 = vmul.f32 %v1431, %v2073
      %v2202 = vadd.f32 %v2074, %v2075
      %v2203 = vadd.f32 %v2202, %v2076
      %v2204 = vadd.f32 %v2203, %v2077
      %v2205 = vadd.f32 %v2204, %v2078
      %v2206 = vadd.f32 %v2205, %v2079
      %v2207 = vadd.f32 %v2206, %v2080
      %v2208 = vadd.f32 %v2207, %v2081
      %v2209 = vadd.f32 %v2208, %v2082
      %v2210 = vadd.f32 %v2209, %v2083
      %v2211 = vadd.f32 %v2210, %v2084
      %v2212 = vadd.f32 %v2211, %v2085
      %v2213 = vadd.f32 %v2212, %v2086
      %v2214 = vadd.f32 %v2213, %v2087
      %v2215 = vadd.f32 %v2214, %v2088
      %v2216 = vadd.f32 %v2215, %v2089
      %v2217 = vadd.f32 %v2216, %v2090
      %v2218 = vadd.f32 %v2217, %v2091
      %v2219 = vadd.f32 %v2218, %v2092
      %v2220 = vadd.f32 %v2219, %v2093
      %v2221 = vadd.f32 %v2220, %v2094
      %v2222 = vadd.f32 %v2221, %v2095
      %v2223 = vadd.f32 %v2222, %v2096
      %v2224 = vadd.f32 %v2223, %v2097
      %v2225 = vadd.f32 %v2224, %v2098
      %v2226 = vadd.f32 %v2225, %v2099
      %v2227 = vadd.f32 %v2226, %v2100
      %v2228 = vadd.f32 %v2227, %v2101
      %v2229 = vadd.f32 %v2228, %v2102
      %v2230 = vadd.f32 %v2229, %v2103
      %v2231 = vadd.f32 %v2230, %v2104
      %v2232 = vadd.f32 %v2231, %v2105
      %v2233 = vadd.f32 %v2232, %v2106
      %v2234 = vadd.f32 %v2233, %v2107
      %v2235 = vadd.f32 %v2234, %v2108
      %v2236 = vadd.f32 %v2235, %v2109
      %v2237 = vadd.f32 %v2236, %v2110
      %v2238 = vadd.f32 %v2237, %v2111
      %v2239 = vadd.f32 %v2238, %v2112
      %v2240 = vadd.f32 %v2239, %v2113
      %v2241 = vadd.f32 %v2240, %v2114
      %v2242 = vadd.f32 %v2241, %v2115
      %v2243 = vadd.f32 %v2242, %v2116
      %v2244 = vadd.f32 %v2243, %v2117
      %v2245 = vadd.f32 %v2244, %v2118
      %v2246 = vadd.f32 %v2245, %v2119
      %v2247 = vadd.f32 %v2246, %v2120
      %v2248 = vadd.f32 %v2247, %v2121
      %v2249 = vadd.f32 %v2248, %v2122
      %v2250 = vadd.f32 %v2249, %v2123
      %v2251 = vadd.f32 %v2250, %v2124
      %v2252 = vadd.f32 %v2251, %v2125
      %v2253 = vadd.f32 %v2252, %v2126
      %v2254 = vadd.f32 %v2253, %v2127
      %v2255 = vadd.f32 %v2254, %v2128
      %v2256 = vadd.f32 %v2255, %v2129
      %v2257 = vadd.f32 %v2256, %v2130
      %v2258 = vadd.f32 %v2257, %v2131
      %v2259 = vadd.f32 %v2258, %v2132
      %v2260 = vadd.f32 %v2259, %v2133
      %v2261 = vadd.f32 %v2260, %v2134
      %v2262 = vadd.f32 %v2261, %v2135
      %v2263 = vadd.f32 %v2262, %v2136
      %v2264 = vadd.f32 %v2263, %v2137
      %v2265 = vadd.f32 %v2264, %v2138
      %v2266 = vadd.f32 %v2265, %v2139
      %v2267 = vadd.f32 %v2266, %v2140
      %v2268 = vadd.f32 %v2267, %v2141
      %v2269 = vadd.f32 %v2268, %v2142
      %v2270 = vadd.f32 %v2269, %v2143
      %v2271 = vadd.f32 %v2270, %v2144
      %v2272 = vadd.f32 %v2271, %v2145
      %v2273 = vadd.f32 %v2272, %v2146
      %v2274 = vadd.f32 %v2273, %v2147
      %v2275 = vadd.f32 %v2274, %v2148
      %v2276 = vadd.f32 %v2275, %v2149
      %v2277 = vadd.f32 %v2276, %v2150
      %v2278 = vadd.f32 %v2277, %v2151
      %v2279 = vadd.f32 %v2278, %v2152
      %v2280 = vadd.f32 %v2279, %v2153
      %v2281 = vadd.f32 %v2280, %v2154
      %v2282 = vadd.f32 %v2281, %v2155
      %v2283 = vadd.f32 %v2282, %v2156
      %v2284 = vadd.f32 %v2283, %v2157
      %v2285 = vadd.f32 %v2284, %v2158
      %v2286 = vadd.f32 %v2285, %v2159
      %v2287 = vadd.f32 %v2286, %v2160
      %v2288 = vadd.f32 %v2287, %v2161
      %v2289 = vadd.f32 %v2288, %v2162
      %v2290 = vadd.f32 %v2289, %v2163
      %v2291 = vadd.f32 %v2290, %v2164
      %v2292 = vadd.f32 %v2291, %v2165
      %v2293 = vadd.f32 %v2292, %v2166
      %v2294 = vadd.f32 %v2293, %v2167
      %v2295 = vadd.f32 %v2294, %v2168
      %v2296 = vadd.f32 %v2295, %v2169
      %v2297 = vadd.f32 %v2296, %v2170
      %v2298 = vadd.f32 %v2297, %v2171
      %v2299 = vadd.f32 %v2298, %v2172
      %v2300 = vadd.f32 %v2299, %v2173
      %v2301 = vadd.f32 %v2300, %v2174
      %v2302 = vadd.f32 %v2301, %v2175
      %v2303 = vadd.f32 %v2302, %v2176
      %v2304 = vadd.f32 %v2303, %v2177
      %v2305 = vadd.f32 %v2304, %v2178
      %v2306 = vadd.f32 %v2305, %v2179
      %v2307 = vadd.f32 %v2306, %v2180
      %v2308 = vadd.f32 %v2307, %v2181
      %v2309 = vadd.f32 %v2308, %v2182
      %v2310 = vadd.f32 %v2309, %v2183
      %v2311 = vadd.f32 %v2310, %v2184
      %v2312 = vadd.f32 %v2311, %v2185
      %v2313 = vadd.f32 %v2312, %v2186
      %v2314 = vadd.f32 %v2313, %v2187
      %v2315 = vadd.f32 %v2314, %v2188
      %v2316 = vadd.f32 %v2315, %v2189
      %v2317 = vadd.f32 %v2316, %v2190
      %v2318 = vadd.f32 %v2317, %v2191
      %v2319 = vadd.f32 %v2318, %v2192
      %v2320 = vadd.f32 %v2319, %v2193
      %v2321 = vadd.f32 %v2320, %v2194
      %v2322 = vadd.f32 %v2321, %v2195
      %v2323 = vadd.f32 %v2322, %v2196
      %v2324 = vadd.f32 %v2323, %v2197
      %v2325 = vadd.f32 %v2324, %v2198
      %v2326 = vadd.f32 %v2325, %v2199
      %v2327 = vadd.f32 %v2326, %v2200
      %v2328 = vadd.f32 %v2327, %v2201
      %v2329 = vrot.slane %v2328, 4
      %v2330 = vadd.f32 %v2328, %v2329
      %v2331 = vrot.slane %v2330, 2
      %v2332 = vadd.f32 %v2330, %v2331
      %v2333 = vrot.slane %v2332, 1
      %v2334 = vadd.f32 %v2332, %v2333
      %v2335 = vmul.f32 %v2334, 0.0009765625
      %v2336 = vld [vmem:[%s3] sm:$0xff]
      %v2337 = vld [vmem:[%s3 + $0x8] sm:$0xff]
      %v2338 = vld [vmem:[%s3 + $0x10] sm:$0xff]
      %v2339 = vld [vmem:[%s3 + $0x18] sm:$0xff]
      %v2340 = vld [vmem:[%s3 + $0x20] sm:$0xff]
      %v2341 = vld [vmem:[%s3 + $0x28] sm:$0xff]
      %v2342 = vld [vmem:[%s3 + $0x30] sm:$0xff]
      %v2343 = vld [vmem:[%s3 + $0x38] sm:$0xff]
      %v2344 = vld [vmem:[%s3 + $0x40] sm:$0xff]
      %v2345 = vld [vmem:[%s3 + $0x48] sm:$0xff]
      %v2346 = vld [vmem:[%s3 + $0x50] sm:$0xff]
      %v2347 = vld [vmem:[%s3 + $0x58] sm:$0xff]
      %v2348 = vld [vmem:[%s3 + $0x60] sm:$0xff]
      %v2349 = vld [vmem:[%s3 + $0x68] sm:$0xff]
      %v2350 = vld [vmem:[%s3 + $0x70] sm:$0xff]
      %v2351 = vld [vmem:[%s3 + $0x78] sm:$0xff]
      %v2352 = vld [vmem:[%s4] sm:$0x1]
      %2353 = vmatprep.subr.mxu0 0.0
      %2354 = vmatpush1.msra.mxu0 %v2336
      %2355 = vmatprep.subr.mxu0 0.0
      %2356 = vmatpush1.msra.mxu0 %v2337
      %2357 = vmatprep.subr.mxu0 0.0
      %2358 = vmatpush1.msra.mxu0 %v2338
      %2359 = vmatprep.subr.mxu0 0.0
      %2360 = vmatpush1.msra.mxu0 %v2339
      %2361 = vmatprep.subr.mxu0 0.0
      %2362 = vmatpush1.msra.mxu0 %v2340
      %2363 = vmatprep.subr.mxu0 0.0
      %2364 = vmatpush1.msra.mxu0 %v2341
      %2365 = vmatprep.subr.mxu0 0.0
      %2366 = vmatpush1.msra.mxu0 %v2342
      %2367 = vmatprep.subr.mxu0 0.0
      %2368 = vmatpush1.msra.mxu0 %v2343
      %2369 = vmatprep.subr.mxu0 0.0
      %2370 = vmatpush1.msra.mxu0 %v2344
      %2371 = vmatprep.subr.mxu0 0.0
      %2372 = vmatpush1.msra.mxu0 %v2345
      %2373 = vmatprep.subr.mxu0 0.0
      %2374 = vmatpush1.msra.mxu0 %v2346
      %2375 = vmatprep.subr.mxu0 0.0
      %2376 = vmatpush1.msra.mxu0 %v2347
      %2377 = vmatprep.subr.mxu0 0.0
      %2378 = vmatpush1.msra.mxu0 %v2348
      %2379 = vmatprep.subr.mxu0 0.0
      %2380 = vmatpush1.msra.mxu0 %v2349
      %2381 = vmatprep.subr.mxu0 0.0
      %2382 = vmatpush1.msra.mxu0 %v2350
      %2383 = vmatprep.subr.mxu0 0.0
      %2384 = vmatpush1.msra.mxu0 %v2351
      %2385 = vmatprep.subr.mxu0 0.0
      %2386 = vmatpush1.msra.mxu0 0.0
      %2387 = vmatprep.subr.mxu0 0.0
      %2388 = vmatpush1.msra.mxu0 0.0
      %2389 = vmatprep.subr.mxu0 0.0
      %2390 = vmatpush1.msra.mxu0 0.0
      %2391 = vmatprep.subr.mxu0 0.0
      %2392 = vmatpush1.msra.mxu0 0.0
      %2393 = vmatprep.subr.mxu0 0.0
      %2394 = vmatpush1.msra.mxu0 0.0
      %2395 = vmatprep.subr.mxu0 0.0
      %2396 = vmatpush1.msra.mxu0 0.0
      %2397 = vmatprep.subr.mxu0 0.0
      %2398 = vmatpush1.msra.mxu0 0.0
      %2399 = vmatprep.subr.mxu0 0.0
      %2400 = vmatpush1.msra.mxu0 0.0
      %2401 = vmatprep.subr.mxu0 0.0
      %2402 = vmatpush1.msra.mxu0 0.0
      %2403 = vmatprep.subr.mxu0 0.0
      %2404 = vmatpush1.msra.mxu0 0.0
      %2405 = vmatprep.subr.mxu0 0.0
      %2406 = vmatpush1.msra.mxu0 0.0
      %2407 = vmatprep.subr.mxu0 0.0
      %2408 = vmatpush1.msra.mxu0 0.0
      %2409 = vmatprep.subr.mxu0 0.0
      %2410 = vmatpush1.msra.mxu0 0.0
      %2411 = vmatprep.subr.mxu0 0.0
      %2412 = vmatpush1.msra.mxu0 0.0
      %2413 = vmatprep.subr.mxu0 0.0
      %2414 = vmatpush1.msra.mxu0 0.0
      %2415 = vmatprep.subr.mxu0 0.0
      %2416 = vmatpush1.msra.mxu0 0.0
      %2417 = vmatprep.mubr.f32.mxu0 0.0
      %2418 = vmatmul.mubr.f32.gmra.mrb[0].mxu0 %v2335
      %v2419 = vpop.f32.mrb[0].mxu0
      %v2420 = vadd.f32 %v2352, %v2419
      %v2421 = vpop.f32.mrb[0].mxu0
      %2422 = vdwg.mxu0
      %v2423 = vlaneseq
      %v2424 = vshrl.u32 %v2423, 7
      %v2425 = vsub.s32 0, %v2424
      %v2426 = vrot.slane %v2420, %v2425
      %2427 = vst [vmem:[%s222] sm:$0xff] %v2426
      %p2428 = scmp.lt.s32.totalorder %s16, 1
      %s2429 = scalar_select %p2428, %s16, 1
      %s2430 = smul.addr %s2429, 8
      %s2431 = scalar_lea.vmem %s5, %s2430
      // Predicated region
      $region41: #{cassva_forward.1} parent=39 // pred_check
        %p2432 = pneg %p144
      $region42: #{cassva_forward.1} parent=39 // pred_check_branch
        %2434 = sbr.rel (%p2432) target = $region44
      $region43: #{cassva_forward.1} parent=39 // pred_region
        _
      $region44: #{cassva_forward.1} parent=39 // pred_fallthru
        _
    $region40: #{cassva_forward.1} parent=5 // pred_fallthru
      _
    %p2435 = scmp.le.s32.totalorder 2, %s11
    // Predicated region
    $region45: #{cassva_forward.1} parent=5 // pred_check
      %p2436 = pneg %p2435
    $region46: #{cassva_forward.1} parent=5 // pred_check_branch
      %2438 = sbr.rel (%p2436) target = $region48
    $region47: #{cassva_forward.1} parent=5 // pred_region
      %s2439 = ssub.s32 %s11, 2
      // Predicated region
      $region49: #{cassva_forward.1} parent=47 // pred_check
        %p2440 = pneg %p150
      $region50: #{cassva_forward.1} parent=47 // pred_check_branch
        %2442 = sbr.rel (%p2440) target = $region52
      $region51: #{cassva_forward.1} parent=47 // pred_region
        %p2443 = scmp.lt.s32.totalorder %s17, 1
        %s2444 = scalar_select %p2443, %s17, 1
        %s2445 = smul.addr %s2444, 8
        %s2446 = scalar_lea.vmem %s5, %s2445
      $region52: #{cassva_forward.1} parent=47 // pred_fallthru
        _
    $region48: #{cassva_forward.1} parent=5 // pred_fallthru
      _
  $region6: #{cassva_forward.1} parent=0 // loop_footer
    %s15 = sadd.s32 1, %s11
  $region7: #{cassva_forward.1} parent=0 // loop_footer_branch
    %10 = sbr.rel target = $region3
  $region8: #{cassva_forward.1} parent=0 // loop_exit
    _

</llo_original>
